<compile_context>
chip_gen: v7x
topology: tpu7x:2x2x1
jax: 0.10.0
libtpu: 0.0.40
codegen_flags: <defaults>
</compile_context>

<pallas_src>
import jax
import jax.numpy as jnp
from jax.experimental import pallas as pl
from jax.experimental.pallas import tpu as pltpu


# ----------------------------------------------------------------------------
# Kernels
# ----------------------------------------------------------------------------
def decoder_step_kernel(emb_ref, ctx_ref, h_ref,
                        wih_e_ref, wih_c_ref, whh_ref, bih_ref, bhh_ref,
                        wfc_e_ref, wfc_h_ref, wfc_c_ref, bfc_ref,
                        logits_ref, hnew_ref, lse_ref,
                        h_scratch, m_scratch, s_scratch):
    """Grid: (num_vocab_tiles,).  GRU runs at j==0; every step emits a logits
    tile and updates the online logsumexp accumulator."""
    j = pl.program_id(0)
    emb = emb_ref[...]          # (B, E)  bf16
    ctx = ctx_ref[...]          # (B, H)  bf16

    @pl.when(j == 0)
    def _gru():
        h = h_ref[...]          # (B, H)  f32
        H = h.shape[1]
        # gi = [embedded ; context] @ W_ih^T + b_ih  (split matmuls, no concat)
        gi = (jnp.dot(emb, wih_e_ref[...], preferred_element_type=jnp.float32)
              + jnp.dot(ctx, wih_c_ref[...], preferred_element_type=jnp.float32)
              + bih_ref[...])
        gh = (jnp.dot(h.astype(jnp.bfloat16), whh_ref[...],
                      preferred_element_type=jnp.float32)
              + bhh_ref[...])

        # PyTorch GRU gate ordering: [r, z, n]  (H is a multiple of 128, so
        # the gate slices land on lane boundaries).
        i_r, i_z, i_n = gi[:, 0:H], gi[:, H:2 * H], gi[:, 2 * H:3 * H]
        h_r, h_z, h_n = gh[:, 0:H], gh[:, H:2 * H], gh[:, 2 * H:3 * H]

        r = jax.nn.sigmoid(i_r + h_r)
        z = jax.nn.sigmoid(i_z + h_z)
        n = jnp.tanh(i_n + r * h_n)
        h_new = (1.0 - z) * n + z * h

        h_scratch[...] = h_new
        hnew_ref[...] = h_new
        m_scratch[...] = jnp.full(m_scratch.shape, -jnp.inf, jnp.float32)
        s_scratch[...] = jnp.zeros(s_scratch.shape, jnp.float32)

    # fc_out( cat([embedded, h_new, context]) ) for this vocab tile.
    h16 = h_scratch[...].astype(jnp.bfloat16)
    logits = (jnp.dot(emb, wfc_e_ref[...], preferred_element_type=jnp.float32)
              + jnp.dot(h16, wfc_h_ref[...], preferred_element_type=jnp.float32)
              + jnp.dot(ctx, wfc_c_ref[...], preferred_element_type=jnp.float32)
              + bfc_ref[...])
    logits_ref[...] = logits

    # Online logsumexp accumulation over vocab tiles.
    tile_max = jnp.max(logits, axis=1, keepdims=True)
    m_new = jnp.maximum(m_scratch[...], tile_max)
    s_scratch[...] = (s_scratch[...] * jnp.exp(m_scratch[...] - m_new)
                      + jnp.sum(jnp.exp(logits - m_new), axis=1, keepdims=True))
    m_scratch[...] = m_new

    @pl.when(j == pl.num_programs(0) - 1)
    def _finish():
        lse_ref[...] = m_scratch[...] + jnp.log(s_scratch[...])


def log_softmax_normalize_kernel(logits_ref, lse_ref, pred_ref):
    """pred = logits - lse   (elementwise, vocab tiles independent)."""
    pred_ref[...] = logits_ref[...] - lse_ref[...]


# ----------------------------------------------------------------------------
# Parameter construction / one-time preparation
# ----------------------------------------------------------------------------
def init_params(key, output_dim, emb_dim, hid_dim):
    """PyTorch-layout parameters (same init conventions as nn.GRU / nn.Linear)."""
    ks = jax.random.split(key, 7)
    emb_table = 0.1 * jax.random.normal(ks[0], (output_dim, emb_dim), jnp.float32)
    emb_table = emb_table.at[1].set(0.0)  # padding_idx=1 (row zeroed at init)

    s = 1.0 / jnp.sqrt(jnp.float32(hid_dim))
    w_ih = jax.random.uniform(ks[1], (3 * hid_dim, emb_dim + hid_dim), jnp.float32, -s, s)
    w_hh = jax.random.uniform(ks[2], (3 * hid_dim, hid_dim), jnp.float32, -s, s)
    b_ih = jax.random.uniform(ks[3], (3 * hid_dim,), jnp.float32, -s, s)
    b_hh = jax.random.uniform(ks[4], (3 * hid_dim,), jnp.float32, -s, s)

    fc_in = emb_dim + 2 * hid_dim
    sf = 1.0 / jnp.sqrt(jnp.float32(fc_in))
    w_fc = jax.random.uniform(ks[5], (output_dim, fc_in), jnp.float32, -sf, sf)
    b_fc = jax.random.uniform(ks[6], (output_dim,), jnp.float32, -sf, sf)

    return dict(embedding=emb_table, w_ih=w_ih, w_hh=w_hh, b_ih=b_ih, b_hh=b_hh,
                w_fc=w_fc, b_fc=b_fc)


def prepare_decoder_params(params):
    """Hoisted one-time prep: transpose + split along concat boundaries, cast
    streamed weights to bf16.  Do this ONCE, not per decode step."""
    H = params["w_hh"].shape[1]
    E = params["w_ih"].shape[1] - H

    wih_T = params["w_ih"].T.astype(jnp.bfloat16)   # (E+H, 3H)
    whh_T = params["w_hh"].T.astype(jnp.bfloat16)   # (H, 3H)
    wfc_T = params["w_fc"].T.astype(jnp.bfloat16)   # (E+2H, V)

    return dict(
        embedding=params["embedding"].astype(jnp.bfloat16),
        wih_e=wih_T[:E], wih_c=wih_T[E:],
        whh=whh_T,
        bih=params["b_ih"].reshape(1, -1).astype(jnp.float32),
        bhh=params["b_hh"].reshape(1, -1).astype(jnp.float32),
        wfc_e=wfc_T[:E], wfc_h=wfc_T[E:E + H], wfc_c=wfc_T[E + H:],
        bfc=params["b_fc"].reshape(1, -1).astype(jnp.float32),
    )


# ----------------------------------------------------------------------------
# Generation-aware sizing helpers
# ----------------------------------------------------------------------------
def _tpu_vmem_capacity_bytes():
    try:
        info = pltpu.get_tpu_info()
        cap = getattr(info, "vmem_capacity_bytes", None)
        if cap:
            return int(cap)
    except Exception:
        pass
    return 64 * 1024 * 1024  # conservative default (v7x-class per-TC VMEM)


def _pick_v_tile(V, vmem_cap):
    # Smaller vocab tiles on 64-MiB-VMEM parts (v7x), larger on 128-MiB parts.
    target = 2048 if vmem_cap <= 80 * 1024 * 1024 else 4096
    if V % 128 != 0 or V <= 128:
        return V
    tv = min(target, V)
    while V % tv != 0:
        tv -= 128
    return max(tv, 128)


def _vmem_limit_bytes(B, E, H, TV, vmem_cap):
    f32, bf16 = 4, 2
    resident_in = (B * E * bf16 + B * H * bf16 + B * H * f32
                   + (E + 2 * H) * 3 * H * bf16 + 2 * 3 * H * f32)
    tile_in = (E + 2 * H) * TV * bf16 + TV * f32
    tile_out = B * TV * f32
    resident_out = B * H * f32 + B * f32
    scratch = B * H * f32 + 2 * B * f32
    need = 2 * (resident_in + tile_in + tile_out + resident_out) + scratch
    return int(min(max(2 * need, 32 * 1024 * 1024), int(0.85 * vmem_cap)))


# ----------------------------------------------------------------------------
# Forward wrapper
# ----------------------------------------------------------------------------
def decoder_forward(tokens, hidden, context, prep, *, tile_v=None):
    """tokens: (B,) int32; hidden, context: (1, B, H) f32
    -> (pred (B, V) f32 log-probs, hidden (1, B, H) f32)."""
    emb_table = prep["embedding"]
    V, E = emb_table.shape
    H = hidden.shape[-1]
    B = tokens.shape[0]
    assert E % 128 == 0 and H % 128 == 0 and V % 128 == 0, \
        "E, H, V must be multiples of 128 (lane alignment for gate slices / vocab tiles)"

    # Embedding lookup (glue, plain JAX gather).
    emb = emb_table[tokens]                     # (B, E) bf16
    # TODO(synk): nn.Dropout is identity at inference time; no RNG path implemented.

    h2d = hidden[0].astype(jnp.float32)         # (B, H)
    ctx2d = context[0].astype(jnp.bfloat16)     # (B, H)

    vmem_cap = _tpu_vmem_capacity_bytes()
    TV = tile_v if tile_v is not None else _pick_v_tile(V, vmem_cap)
    assert V % TV == 0 and TV % 128 == 0
    nV = V // TV
    vmem_limit = _vmem_limit_bytes(B, E, H, TV, vmem_cap)

    const = lambda j: (0, 0)       # resident blocks (DMA'd once)
    vtile = lambda j: (0, j)       # streamed vocab tiles

    grid_spec = pltpu.PrefetchScalarGridSpec(
        num_scalar_prefetch=0,
        grid=(nV,),
        in_specs=[
            pl.BlockSpec((B, E), const),            # emb
            pl.BlockSpec((B, H), const),            # ctx
            pl.BlockSpec((B, H), const),            # h
            pl.BlockSpec((E, 3 * H), const),        # wih_e
            pl.BlockSpec((H, 3 * H), const),        # wih_c
            pl.BlockSpec((H, 3 * H), const),        # whh
            pl.BlockSpec((1, 3 * H), const),        # bih
            pl.BlockSpec((1, 3 * H), const),        # bhh
            pl.BlockSpec((E, TV), vtile),           # wfc_e
            pl.BlockSpec((H, TV), vtile),           # wfc_h
            pl.BlockSpec((H, TV), vtile),           # wfc_c
            pl.BlockSpec((1, TV), vtile),           # bfc
        ],
        out_specs=[
            pl.BlockSpec((B, TV), vtile),           # raw logits
            pl.BlockSpec((B, H), const),            # h_new
            pl.BlockSpec((B, 1), const),            # lse
        ],
        scratch_shapes=[
            pltpu.VMEM((B, H), jnp.float32),        # h_new scratch
            pltpu.VMEM((B, 1), jnp.float32),        # running max
            pltpu.VMEM((B, 1), jnp.float32),        # running sum-exp
        ],
    )

    logits, h_new, lse = pl.pallas_call(
        decoder_step_kernel,
        out_shape=(jax.ShapeDtypeStruct((B, V), jnp.float32),
                   jax.ShapeDtypeStruct((B, H), jnp.float32),
                   jax.ShapeDtypeStruct((B, 1), jnp.float32)),
        grid_spec=grid_spec,
        compiler_params=pltpu.CompilerParams(
            dimension_semantics=("arbitrary",),     # online lse is sequential over V tiles
            vmem_limit_bytes=vmem_limit),
    )(emb, ctx2d, h2d,
      prep["wih_e"], prep["wih_c"], prep["whh"], prep["bih"], prep["bhh"],
      prep["wfc_e"], prep["wfc_h"], prep["wfc_c"], prep["bfc"])

    # Second pass: pred = logits - lse (vocab tiles independent -> "parallel").
    pred = pl.pallas_call(
        log_softmax_normalize_kernel,
        out_shape=jax.ShapeDtypeStruct((B, V), jnp.float32),
        grid_spec=pltpu.PrefetchScalarGridSpec(
            num_scalar_prefetch=0,
            grid=(nV,),
            in_specs=[pl.BlockSpec((B, TV), vtile),
                      pl.BlockSpec((B, 1), const)],
            out_specs=pl.BlockSpec((B, TV), vtile),
        ),
        compiler_params=pltpu.CompilerParams(
            dimension_semantics=("parallel",)),
    )(logits, lse)

    return pred, h_new[None, :, :]


# ----------------------------------------------------------------------------
# Demo
# ----------------------------------------------------------------------------
if __name__ == "__main__":
    # Small, TPU-friendly sizes; tile_v=128 forces a multi-tile vocab grid.
    B, E, H, V = 8, 128, 128, 512

    key = jax.random.PRNGKey(0)
    pkey, ikey = jax.random.split(key)
    raw_params = init_params(pkey, output_dim=V, emb_dim=E, hid_dim=H)
    prep = prepare_decoder_params(raw_params)   # one-time transpose/split/bf16 cast

    k1, k2, k3 = jax.random.split(ikey, 3)
    tokens = jax.random.randint(k1, (B,), 0, V, dtype=jnp.int32)
    hidden = jax.random.normal(k2, (1, B, H), jnp.float32)
    context = jax.random.normal(k3, (1, B, H), jnp.float32)

    fwd = jax.jit(decoder_forward, static_argnames=("tile_v",))
    pred, new_hidden = fwd(tokens, hidden, context, prep, tile_v=128)
    jax.block_until_ready((pred, new_hidden))

    assert pred.shape == (B, V)
    assert new_hidden.shape == (1, B, H)
    # log-softmax rows should (approximately) exponentiate-and-sum to 1.
    row_sums = jnp.sum(jnp.exp(pred), axis=1)
    assert bool(jnp.all(jnp.abs(row_sums - 1.0) < 1e-3))
    print("KERNEL_OK")
</pallas_src>

<mosaic_0001>
module attributes {stable_mosaic.version = 11 : i64} {
  func.func @log_softmax_normalize_kernel(%arg0: i32, %arg1: memref<8x128xf32, #tpu.memory_space<vmem>>, %arg2: memref<8x1xf32, #tpu.memory_space<vmem>>, %arg3: memref<8x128xf32, #tpu.memory_space<vmem>>) attributes {dimension_semantics = [#tpu.dimension_semantics<parallel>], iteration_bounds = array<i64: 4>, scalar_prefetch = 0 : i64, scratch_operands = 0 : i64, tpu.core_type = #tpu.core_type<tc>, window_params = [{transform_indices = @transform_0, window_bounds = array<i64: 8, 128>}, {pipeline_mode = #tpu.pipeline_mode<synchronous>, transform_indices = @transform_1, window_bounds = array<i64: 8, 1>}, {transform_indices = @transform_2, window_bounds = array<i64: 8, 128>}]} {
    %c0 = arith.constant 0 : index
    %c0_0 = arith.constant 0 : index
    %0 = vector.load %arg1[%c0, %c0_0] : memref<8x128xf32, #tpu.memory_space<vmem>>, vector<8x128xf32>
    %c0_1 = arith.constant 0 : index
    %c0_2 = arith.constant 0 : index
    %1 = vector.load %arg2[%c0_1, %c0_2] : memref<8x1xf32, #tpu.memory_space<vmem>>, vector<8x1xf32>
    %2 = vector.broadcast %1 : vector<8x1xf32> to vector<8x128xf32>
    %3 = arith.subf %0, %2 : vector<8x128xf32>
    %c0_3 = arith.constant 0 : index
    %c0_4 = arith.constant 0 : index
    %4 = vector.load %arg3[%c0_3, %c0_4] : memref<8x128xf32, #tpu.memory_space<vmem>>, vector<8x128xf32>
    tpu.vector_store %arg3[%c0_3, %c0_4], %3 {strides = array<i32>} : memref<8x128xf32, #tpu.memory_space<vmem>>, vector<8x128xf32>,
    return
  }
  func.func @transform_0(%arg0: i32) -> (i32, i32) {
    %c0_i32 = arith.constant 0 : i32
    %c0_i32_0 = arith.constant 0 : i32
    return %c0_i32, %arg0 : i32, i32
  }
  func.func @transform_1(%arg0: i32) -> (i32, i32) {
    %c0_i32 = arith.constant 0 : i32
    %c0_i32_0 = arith.constant 0 : i32
    %c0_i32_1 = arith.constant 0 : i32
    return %c0_i32, %c0_i32_0 : i32, i32
  }
  func.func @transform_2(%arg0: i32) -> (i32, i32) {
    %c0_i32 = arith.constant 0 : i32
    %c0_i32_0 = arith.constant 0 : i32
    return %c0_i32, %arg0 : i32, i32
  }
}

module attributes {stable_mosaic.version = 11 : i64} {
  func.func @decoder_step_kernel(%arg0: i32, %arg1: memref<8x128xbf16, #tpu.memory_space<vmem>>, %arg2: memref<8x128xbf16, #tpu.memory_space<vmem>>, %arg3: memref<8x128xf32, #tpu.memory_space<vmem>>, %arg4: memref<128x384xbf16, #tpu.memory_space<vmem>>, %arg5: memref<128x384xbf16, #tpu.memory_space<vmem>>, %arg6: memref<128x384xbf16, #tpu.memory_space<vmem>>, %arg7: memref<1x384xf32, #tpu.memory_space<vmem>>, %arg8: memref<1x384xf32, #tpu.memory_space<vmem>>, %arg9: memref<128x128xbf16, #tpu.memory_space<vmem>>, %arg10: memref<128x128xbf16, #tpu.memory_space<vmem>>, %arg11: memref<128x128xbf16, #tpu.memory_space<vmem>>, %arg12: memref<1x128xf32, #tpu.memory_space<vmem>>, %arg13: memref<8x128xf32, #tpu.memory_space<vmem>>, %arg14: memref<8x128xf32, #tpu.memory_space<vmem>>, %arg15: memref<8x1xf32, #tpu.memory_space<vmem>>, %arg16: memref<8x128xf32, #tpu.memory_space<vmem>>, %arg17: memref<8x1xf32, #tpu.memory_space<vmem>>, %arg18: memref<8x1xf32, #tpu.memory_space<vmem>>) attributes {dimension_semantics = [#tpu.dimension_semantics<arbitrary>], iteration_bounds = array<i64: 4>, scalar_prefetch = 0 : i64, scratch_operands = 3 : i64, tpu.core_type = #tpu.core_type<tc>, window_params = [{pipeline_mode = #tpu.pipeline_mode<synchronous>, transform_indices = @transform_0, window_bounds = array<i64: 8, 128>}, {pipeline_mode = #tpu.pipeline_mode<synchronous>, transform_indices = @transform_1, window_bounds = array<i64: 8, 128>}, {pipeline_mode = #tpu.pipeline_mode<synchronous>, transform_indices = @transform_2, window_bounds = array<i64: 8, 128>}, {pipeline_mode = #tpu.pipeline_mode<synchronous>, transform_indices = @transform_3, window_bounds = array<i64: 128, 384>}, {pipeline_mode = #tpu.pipeline_mode<synchronous>, transform_indices = @transform_4, window_bounds = array<i64: 128, 384>}, {pipeline_mode = #tpu.pipeline_mode<synchronous>, transform_indices = @transform_5, window_bounds = array<i64: 128, 384>}, {pipeline_mode = #tpu.pipeline_mode<synchronous>, transform_indices = @transform_6, window_bounds = array<i64: 1, 384>}, {pipeline_mode = #tpu.pipeline_mode<synchronous>, transform_indices = @transform_7, window_bounds = array<i64: 1, 384>}, {transform_indices = @transform_8, window_bounds = array<i64: 128, 128>}, {transform_indices = @transform_9, window_bounds = array<i64: 128, 128>}, {transform_indices = @transform_10, window_bounds = array<i64: 128, 128>}, {transform_indices = @transform_11, window_bounds = array<i64: 1, 128>}, {transform_indices = @transform_12, window_bounds = array<i64: 8, 128>}, {pipeline_mode = #tpu.pipeline_mode<synchronous>, transform_indices = @transform_13, window_bounds = array<i64: 8, 128>}, {pipeline_mode = #tpu.pipeline_mode<synchronous>, transform_indices = @transform_14, window_bounds = array<i64: 8, 1>}]} {
    %c0 = arith.constant 0 : index
    %c0_0 = arith.constant 0 : index
    %0 = vector.load %arg1[%c0, %c0_0] : memref<8x128xbf16, #tpu.memory_space<vmem>>, vector<8x128xbf16>
    %c0_1 = arith.constant 0 : index
    %c0_2 = arith.constant 0 : index
    %1 = vector.load %arg2[%c0_1, %c0_2] : memref<8x128xbf16, #tpu.memory_space<vmem>>, vector<8x128xbf16>
    %c0_i32 = arith.constant 0 : i32
    %2 = arith.cmpi eq, %arg0, %c0_i32 : i32
    %3 = arith.extui %2 : i1 to i32
    %c0_i32_3 = arith.constant 0 : i32
    %4 = arith.cmpi ne, %3, %c0_i32_3 : i32
    scf.if %4 {
      %c0_31 = arith.constant 0 : index
      %c0_32 = arith.constant 0 : index
      %39 = vector.load %arg3[%c0_31, %c0_32] : memref<8x128xf32, #tpu.memory_space<vmem>>, vector<8x128xf32>
      %c0_33 = arith.constant 0 : index
      %c0_34 = arith.constant 0 : index
      %40 = vector.load %arg4[%c0_33, %c0_34] : memref<128x384xbf16, #tpu.memory_space<vmem>>, vector<128x384xbf16>
      %cst_35 = arith.constant dense<0.000000e+00> : vector<8x384xf32>
      %41 = tpu.matmul %0, %40, %cst_35 {dimension_numbers = #tpu.dot_dimension_numbers<[1], [0], [0], [1], [0, 0, 1, 1], [], []>} : vector<8x128xbf16>, vector<128x384xbf16>, vector<8x384xf32> -> vector<8x384xf32>
      %c0_36 = arith.constant 0 : index
      %c0_37 = arith.constant 0 : index
      %42 = vector.load %arg5[%c0_36, %c0_37] : memref<128x384xbf16, #tpu.memory_space<vmem>>, vector<128x384xbf16>
      %cst_38 = arith.constant dense<0.000000e+00> : vector<8x384xf32>
      %43 = tpu.matmul %1, %42, %cst_38 {dimension_numbers = #tpu.dot_dimension_numbers<[1], [0], [0], [1], [0, 0, 1, 1], [], []>} : vector<8x128xbf16>, vector<128x384xbf16>, vector<8x384xf32> -> vector<8x384xf32>
      %44 = arith.addf %41, %43 : vector<8x384xf32>
      %c0_39 = arith.constant 0 : index
      %c0_40 = arith.constant 0 : index
      %45 = vector.load %arg7[%c0_39, %c0_40] : memref<1x384xf32, #tpu.memory_space<vmem>>, vector<1x384xf32>
      %46 = vector.broadcast %45 : vector<1x384xf32> to vector<8x384xf32>
      %47 = arith.addf %44, %46 : vector<8x384xf32>
      %48 = arith.truncf %39 : vector<8x128xf32> to vector<8x128xbf16>
      %c0_41 = arith.constant 0 : index
      %c0_42 = arith.constant 0 : index
      %49 = vector.load %arg6[%c0_41, %c0_42] : memref<128x384xbf16, #tpu.memory_space<vmem>>, vector<128x384xbf16>
      %cst_43 = arith.constant dense<0.000000e+00> : vector<8x384xf32>
      %50 = tpu.matmul %48, %49, %cst_43 {dimension_numbers = #tpu.dot_dimension_numbers<[1], [0], [0], [1], [0, 0, 1, 1], [], []>} : vector<8x128xbf16>, vector<128x384xbf16>, vector<8x384xf32> -> vector<8x384xf32>
      %c0_44 = arith.constant 0 : index
      %c0_45 = arith.constant 0 : index
      %51 = vector.load %arg8[%c0_44, %c0_45] : memref<1x384xf32, #tpu.memory_space<vmem>>, vector<1x384xf32>
      %52 = vector.broadcast %51 : vector<1x384xf32> to vector<8x384xf32>
      %53 = arith.addf %50, %52 : vector<8x384xf32>
      %54 = vector.extract_strided_slice %47 {offsets = [0, 0], sizes = [8, 128], strides = [1, 1]} : vector<8x384xf32> to vector<8x128xf32>
      %55 = vector.extract_strided_slice %47 {offsets = [0, 128], sizes = [8, 128], strides = [1, 1]} : vector<8x384xf32> to vector<8x128xf32>
      %56 = vector.extract_strided_slice %47 {offsets = [0, 256], sizes = [8, 128], strides = [1, 1]} : vector<8x384xf32> to vector<8x128xf32>
      %57 = vector.extract_strided_slice %53 {offsets = [0, 0], sizes = [8, 128], strides = [1, 1]} : vector<8x384xf32> to vector<8x128xf32>
      %58 = vector.extract_strided_slice %53 {offsets = [0, 128], sizes = [8, 128], strides = [1, 1]} : vector<8x384xf32> to vector<8x128xf32>
      %59 = vector.extract_strided_slice %53 {offsets = [0, 256], sizes = [8, 128], strides = [1, 1]} : vector<8x384xf32> to vector<8x128xf32>
      %60 = arith.addf %54, %57 : vector<8x128xf32>
      %61 = arith.negf %60 : vector<8x128xf32>
      %62 = math.exp %61 : vector<8x128xf32>
      %cst_46 = arith.constant 1.000000e+00 : f32
      %63 = vector.broadcast %cst_46 : f32 to vector<8x128xf32>
      %64 = arith.addf %63, %62 : vector<8x128xf32>
      %65 = arith.divf %63, %64 : vector<8x128xf32>
      %66 = arith.addf %55, %58 : vector<8x128xf32>
      %67 = arith.negf %66 : vector<8x128xf32>
      %68 = math.exp %67 : vector<8x128xf32>
      %cst_47 = arith.constant 1.000000e+00 : f32
      %69 = vector.broadcast %cst_47 : f32 to vector<8x128xf32>
      %70 = arith.addf %69, %68 : vector<8x128xf32>
      %71 = arith.divf %69, %70 : vector<8x128xf32>
      %72 = arith.mulf %65, %59 : vector<8x128xf32>
      %73 = arith.addf %56, %72 : vector<8x128xf32>
      %74 = math.tanh %73 : vector<8x128xf32>
      %cst_48 = arith.constant 1.000000e+00 : f32
      %75 = vector.broadcast %cst_48 : f32 to vector<8x128xf32>
      %76 = arith.subf %75, %71 : vector<8x128xf32>
      %77 = arith.mulf %76, %74 : vector<8x128xf32>
      %78 = arith.mulf %71, %39 : vector<8x128xf32>
      %79 = arith.addf %77, %78 : vector<8x128xf32>
      %c0_49 = arith.constant 0 : index
      %c0_50 = arith.constant 0 : index
      %80 = vector.load %arg16[%c0_49, %c0_50] : memref<8x128xf32, #tpu.memory_space<vmem>>, vector<8x128xf32>
      tpu.vector_store %arg16[%c0_49, %c0_50], %79 {strides = array<i32>} : memref<8x128xf32, #tpu.memory_space<vmem>>, vector<8x128xf32>,
      %c0_51 = arith.constant 0 : index
      %c0_52 = arith.constant 0 : index
      %81 = vector.load %arg14[%c0_51, %c0_52] : memref<8x128xf32, #tpu.memory_space<vmem>>, vector<8x128xf32>
      tpu.vector_store %arg14[%c0_51, %c0_52], %79 {strides = array<i32>} : memref<8x128xf32, #tpu.memory_space<vmem>>, vector<8x128xf32>,
      %cst_53 = arith.constant 0xFF800000 : f32
      %82 = vector.broadcast %cst_53 : f32 to vector<8x1xf32>
      %c0_54 = arith.constant 0 : index
      %c0_55 = arith.constant 0 : index
      %83 = vector.load %arg17[%c0_54, %c0_55] : memref<8x1xf32, #tpu.memory_space<vmem>>, vector<8x1xf32>
      tpu.vector_store %arg17[%c0_54, %c0_55], %82 {strides = array<i32>} : memref<8x1xf32, #tpu.memory_space<vmem>>, vector<8x1xf32>,
      %cst_56 = arith.constant 0.000000e+00 : f32
      %84 = vector.broadcast %cst_56 : f32 to vector<8x1xf32>
      %c0_57 = arith.constant 0 : index
      %c0_58 = arith.constant 0 : index
      %85 = vector.load %arg18[%c0_57, %c0_58] : memref<8x1xf32, #tpu.memory_space<vmem>>, vector<8x1xf32>
      tpu.vector_store %arg18[%c0_57, %c0_58], %84 {strides = array<i32>} : memref<8x1xf32, #tpu.memory_space<vmem>>, vector<8x1xf32>,
    } else {
    }
    %c0_4 = arith.constant 0 : index
    %c0_5 = arith.constant 0 : index
    %5 = vector.load %arg16[%c0_4, %c0_5] : memref<8x128xf32, #tpu.memory_space<vmem>>, vector<8x128xf32>
    %6 = arith.truncf %5 : vector<8x128xf32> to vector<8x128xbf16>
    %c0_6 = arith.constant 0 : index
    %c0_7 = arith.constant 0 : index
    %7 = vector.load %arg9[%c0_6, %c0_7] : memref<128x128xbf16, #tpu.memory_space<vmem>>, vector<128x128xbf16>
    %cst = arith.constant dense<0.000000e+00> : vector<8x128xf32>
    %8 = tpu.matmul %0, %7, %cst {dimension_numbers = #tpu.dot_dimension_numbers<[1], [0], [0], [1], [0, 0, 1, 1], [], []>} : vector<8x128xbf16>, vector<128x128xbf16>, vector<8x128xf32> -> vector<8x128xf32>
    %c0_8 = arith.constant 0 : index
    %c0_9 = arith.constant 0 : index
    %9 = vector.load %arg10[%c0_8, %c0_9] : memref<128x128xbf16, #tpu.memory_space<vmem>>, vector<128x128xbf16>
    %cst_10 = arith.constant dense<0.000000e+00> : vector<8x128xf32>
    %10 = tpu.matmul %6, %9, %cst_10 {dimension_numbers = #tpu.dot_dimension_numbers<[1], [0], [0], [1], [0, 0, 1, 1], [], []>} : vector<8x128xbf16>, vector<128x128xbf16>, vector<8x128xf32> -> vector<8x128xf32>
    %11 = arith.addf %8, %10 : vector<8x128xf32>
    %c0_11 = arith.constant 0 : index
    %c0_12 = arith.constant 0 : index
    %12 = vector.load %arg11[%c0_11, %c0_12] : memref<128x128xbf16, #tpu.memory_space<vmem>>, vector<128x128xbf16>
    %cst_13 = arith.constant dense<0.000000e+00> : vector<8x128xf32>
    %13 = tpu.matmul %1, %12, %cst_13 {dimension_numbers = #tpu.dot_dimension_numbers<[1], [0], [0], [1], [0, 0, 1, 1], [], []>} : vector<8x128xbf16>, vector<128x128xbf16>, vector<8x128xf32> -> vector<8x128xf32>
    %14 = arith.addf %11, %13 : vector<8x128xf32>
    %c0_14 = arith.constant 0 : index
    %c0_15 = arith.constant 0 : index
    %15 = vector.load %arg12[%c0_14, %c0_15] : memref<1x128xf32, #tpu.memory_space<vmem>>, vector<1x128xf32>
    %16 = vector.broadcast %15 : vector<1x128xf32> to vector<8x128xf32>
    %17 = arith.addf %14, %16 : vector<8x128xf32>
    %c0_16 = arith.constant 0 : index
    %c0_17 = arith.constant 0 : index
    %18 = vector.load %arg13[%c0_16, %c0_17] : memref<8x128xf32, #tpu.memory_space<vmem>>, vector<8x128xf32>
    tpu.vector_store %arg13[%c0_16, %c0_17], %17 {strides = array<i32>} : memref<8x128xf32, #tpu.memory_space<vmem>>, vector<8x128xf32>,
    %cst_18 = arith.constant dense<0xFF800000> : vector<8xf32>
    %19 = vector.multi_reduction <maximumf>, %17, %cst_18 [1] : vector<8x128xf32> to vector<8xf32>
    %20 = vector.shape_cast %19 : vector<8xf32> to vector<8x1xf32>
    %c0_19 = arith.constant 0 : index
    %c0_20 = arith.constant 0 : index
    %21 = vector.load %arg17[%c0_19, %c0_20] : memref<8x1xf32, #tpu.memory_space<vmem>>, vector<8x1xf32>
    %22 = arith.maximumf %21, %20 : vector<8x1xf32>
    %c0_21 = arith.constant 0 : index
    %c0_22 = arith.constant 0 : index
    %23 = vector.load %arg18[%c0_21, %c0_22] : memref<8x1xf32, #tpu.memory_space<vmem>>, vector<8x1xf32>
    %c0_23 = arith.constant 0 : index
    %c0_24 = arith.constant 0 : index
    %24 = vector.load %arg17[%c0_23, %c0_24] : memref<8x1xf32, #tpu.memory_space<vmem>>, vector<8x1xf32>
    %25 = arith.subf %24, %22 : vector<8x1xf32>
    %26 = math.exp %25 : vector<8x1xf32>
    %27 = arith.mulf %23, %26 : vector<8x1xf32>
    %28 = vector.broadcast %22 : vector<8x1xf32> to vector<8x128xf32>
    %29 = arith.subf %17, %28 : vector<8x128xf32>
    %30 = math.exp %29 : vector<8x128xf32>
    %cst_25 = arith.constant dense<0.000000e+00> : vector<8xf32>
    %31 = vector.multi_reduction <add>, %30, %cst_25 [1] : vector<8x128xf32> to vector<8xf32>
    %32 = vector.shape_cast %31 : vector<8xf32> to vector<8x1xf32>
    %33 = arith.addf %27, %32 : vector<8x1xf32>
    %c0_26 = arith.constant 0 : index
    %c0_27 = arith.constant 0 : index
    %34 = vector.load %arg18[%c0_26, %c0_27] : memref<8x1xf32, #tpu.memory_space<vmem>>, vector<8x1xf32>
    tpu.vector_store %arg18[%c0_26, %c0_27], %33 {strides = array<i32>} : memref<8x1xf32, #tpu.memory_space<vmem>>, vector<8x1xf32>,
    %c0_28 = arith.constant 0 : index
    %c0_29 = arith.constant 0 : index
    %35 = vector.load %arg17[%c0_28, %c0_29] : memref<8x1xf32, #tpu.memory_space<vmem>>, vector<8x1xf32>
    tpu.vector_store %arg17[%c0_28, %c0_29], %22 {strides = array<i32>} : memref<8x1xf32, #tpu.memory_space<vmem>>, vector<8x1xf32>,
    %c3_i32 = arith.constant 3 : i32
    %36 = arith.cmpi eq, %arg0, %c3_i32 : i32
    %37 = arith.extui %36 : i1 to i32
    %c0_i32_30 = arith.constant 0 : i32
    %38 = arith.cmpi ne, %37, %c0_i32_30 : i32
    scf.if %38 {
      %c0_31 = arith.constant 0 : index
      %c0_32 = arith.constant 0 : index
      %39 = vector.load %arg17[%c0_31, %c0_32] : memref<8x1xf32, #tpu.memory_space<vmem>>, vector<8x1xf32>
      %c0_33 = arith.constant 0 : index
      %c0_34 = arith.constant 0 : index
      %40 = vector.load %arg18[%c0_33, %c0_34] : memref<8x1xf32, #tpu.memory_space<vmem>>, vector<8x1xf32>
      %41 = math.log %40 : vector<8x1xf32>
      %42 = arith.addf %39, %41 : vector<8x1xf32>
      %c0_35 = arith.constant 0 : index
      %c0_36 = arith.constant 0 : index
      %43 = vector.load %arg15[%c0_35, %c0_36] : memref<8x1xf32, #tpu.memory_space<vmem>>, vector<8x1xf32>
      tpu.vector_store %arg15[%c0_35, %c0_36], %42 {strides = array<i32>} : memref<8x1xf32, #tpu.memory_space<vmem>>, vector<8x1xf32>,
    } else {
    }
    return
  }
  func.func @transform_0(%arg0: i32) -> (i32, i32) {
    %c0_i32 = arith.constant 0 : i32
    %c0_i32_0 = arith.constant 0 : i32
    %c0_i32_1 = arith.constant 0 : i32
    return %c0_i32, %c0_i32_0 : i32, i32
  }
  func.func @transform_1(%arg0: i32) -> (i32, i32) {
    %c0_i32 = arith.constant 0 : i32
    %c0_i32_0 = arith.constant 0 : i32
    %c0_i32_1 = arith.constant 0 : i32
    return %c0_i32, %c0_i32_0 : i32, i32
  }
  func.func @transform_2(%arg0: i32) -> (i32, i32) {
    %c0_i32 = arith.constant 0 : i32
    %c0_i32_0 = arith.constant 0 : i32
    %c0_i32_1 = arith.constant 0 : i32
    return %c0_i32, %c0_i32_0 : i32, i32
  }
  func.func @transform_3(%arg0: i32) -> (i32, i32) {
    %c0_i32 = arith.constant 0 : i32
    %c0_i32_0 = arith.constant 0 : i32
    %c0_i32_1 = arith.constant 0 : i32
    return %c0_i32, %c0_i32_0 : i32, i32
  }
  func.func @transform_4(%arg0: i32) -> (i32, i32) {
    %c0_i32 = arith.constant 0 : i32
    %c0_i32_0 = arith.constant 0 : i32
    %c0_i32_1 = arith.constant 0 : i32
    return %c0_i32, %c0_i32_0 : i32, i32
  }
  func.func @transform_5(%arg0: i32) -> (i32, i32) {
    %c0_i32 = arith.constant 0 : i32
    %c0_i32_0 = arith.constant 0 : i32
    %c0_i32_1 = arith.constant 0 : i32
    return %c0_i32, %c0_i32_0 : i32, i32
  }
  func.func @transform_6(%arg0: i32) -> (i32, i32) {
    %c0_i32 = arith.constant 0 : i32
    %c0_i32_0 = arith.constant 0 : i32
    %c0_i32_1 = arith.constant 0 : i32
    return %c0_i32, %c0_i32_0 : i32, i32
  }
  func.func @transform_7(%arg0: i32) -> (i32, i32) {
    %c0_i32 = arith.constant 0 : i32
    %c0_i32_0 = arith.constant 0 : i32
    %c0_i32_1 = arith.constant 0 : i32
    return %c0_i32, %c0_i32_0 : i32, i32
  }
  func.func @transform_8(%arg0: i32) -> (i32, i32) {
    %c0_i32 = arith.constant 0 : i32
    %c0_i32_0 = arith.constant 0 : i32
    return %c0_i32, %arg0 : i32, i32
  }
  func.func @transform_9(%arg0: i32) -> (i32, i32) {
    %c0_i32 = arith.constant 0 : i32
    %c0_i32_0 = arith.constant 0 : i32
    return %c0_i32, %arg0 : i32, i32
  }
  func.func @transform_10(%arg0: i32) -> (i32, i32) {
    %c0_i32 = arith.constant 0 : i32
    %c0_i32_0 = arith.constant 0 : i32
    return %c0_i32, %arg0 : i32, i32
  }
  func.func @transform_11(%arg0: i32) -> (i32, i32) {
    %c0_i32 = arith.constant 0 : i32
    %c0_i32_0 = arith.constant 0 : i32
    return %c0_i32, %arg0 : i32, i32
  }
  func.func @transform_12(%arg0: i32) -> (i32, i32) {
    %c0_i32 = arith.constant 0 : i32
    %c0_i32_0 = arith.constant 0 : i32
    return %c0_i32, %arg0 : i32, i32
  }
  func.func @transform_13(%arg0: i32) -> (i32, i32) {
    %c0_i32 = arith.constant 0 : i32
    %c0_i32_0 = arith.constant 0 : i32
    %c0_i32_1 = arith.constant 0 : i32
    return %c0_i32, %c0_i32_0 : i32, i32
  }
  func.func @transform_14(%arg0: i32) -> (i32, i32) {
    %c0_i32 = arith.constant 0 : i32
    %c0_i32_0 = arith.constant 0 : i32
    %c0_i32_1 = arith.constant 0 : i32
    return %c0_i32, %c0_i32_0 : i32, i32
  }
}

</mosaic_0001>

<llo_original>
// kernel: decoder_forward.3
$region0: #{decoder_forward.3}
  #allocation0 [shape = 'u32[]', space=smem, size = 0x4, offset = 0x4, fixed_abs, tag = 'smem constant byte address 0x4 - core index']
  #allocation1 [shape = 'u32[144,128]{1,0:T(1,128)}', space=vmem, size = 0x12000, scoped, tag = 'internal scratch']
  %s0 = inlined_call_operand.vmem [shape: f32[8,512], index: 0, kind: input, shape index: {}]
  %s1 = inlined_call_operand.vmem [shape: f32[8,1], index: 1, kind: input, shape index: {}]
  %s2 = inlined_call_operand.hbm [shape: f32[8,512], index: 2, kind: output, shape index: {}]
  %s3 = sld [smem:[#allocation0]]
  $region41: #{decoder_forward.3} parent=0
    _
  %s5 = ssub.s32 1, %s3
  %s6 = scalar_select 0, %s5, %s3
  $region1: #{decoder_forward.3} parent=0
    #allocation2 [shape = 'u8[8192]{0}', space=vmem, size = 0x2000, scoped, tag = 'output window, operand 0']
    #allocation3 [shape = 's32[2]{0}', space=sflag, size = 0x8, scoped, tag = 'scoped memory for decoder_forward.3']
    %7 = vsyncpa [#allocation3], 0
    %s8 = scalar_lea.sflag [#allocation3], 1
    %9 = vsyncpa %s8, 0
    loop: start=0, step=1, limit=6
    $region2: #{decoder_forward.3} parent=1 // loop_pre_header
      _
    $region3: #{decoder_forward.3} parent=1 // loop_header
      %s11 = sphi 0, %s15
      %p12 = scmp.ge.s32.totalorder %s11, 6
      %s21 = sphi 0, %s23
      %s24 = sphi 0, %s21
      %s25 = sphi 0, %s24
      %s41 = sphi 0, %s25
      %s45 = sphi 0, %s45
      %s47 = sphi 0, %s45
      %s48 = sphi 0, %s47
      %s62 = sphi 0, %s48
      %s68 = sphi 0, %s70
      %s71 = sphi 0, %s68
      %s72 = sphi 0, %s71
      %s88 = sphi 0, %s72
    $region4: #{decoder_forward.3} parent=1 // loop_header_branch
      %14 = sbr.rel (%p12) target = $region8
    $region5: #{decoder_forward.3} parent=1 // loop_body
      %s16 = ssub.s32 %s11, 1
      %s17 = ssub.s32 %s11, 2
      %s18 = sadd.s32 %s11, 1
      %s19 = ssub.s32 %s11, %s18
      %p20 = scmp.eq.s32.totalorder %s19, 0
      %s22 = sadd.s32 %s21, 1
      %s23 = scalar_select %p20, %s21, %s22
      %p26 = pneg %p20
      %p27 = scmp.eq.s32.totalorder %s11, 3
      %p28 = por %p26, %p27
      %p29 = scmp.ne.s32.totalorder %s21, %s24
      %p30 = scmp.eq.s32.totalorder %s11, 0
      %p31 = por %p29, %p30
      %p32 = scmp.ne.s32.totalorder %s21, %s24
      %p33 = scmp.eq.s32.totalorder %s16, 3
      %p34 = por %p32, %p33
      %p35 = scmp.ne.s32.totalorder %s24, %s25
      %p36 = scmp.eq.s32.totalorder %s16, 0
      %p37 = por %p35, %p36
      %p38 = scmp.ne.s32.totalorder %s24, %s25
      %p39 = scmp.eq.s32.totalorder %s17, 3
      %p40 = por %p38, %p39
      %p42 = scmp.ne.s32.totalorder %s25, %s41
      %p43 = scmp.eq.s32.totalorder %s17, 0
      %p44 = por %p42, %p43
      %s46 = sadd.s32 %s45, 1
      %p49 = scmp.eq.s32.totalorder %s11, 3
      %p50 = scmp.ne.s32.totalorder %s45, %s47
      %p51 = scmp.eq.s32.totalorder %s11, 0
      %p52 = por %p50, %p51
      %p53 = scmp.ne.s32.totalorder %s45, %s47
      %p54 = scmp.eq.s32.totalorder %s16, 3
      %p55 = por %p53, %p54
      %p56 = scmp.ne.s32.totalorder %s47, %s48
      %p57 = scmp.eq.s32.totalorder %s16, 0
      %p58 = por %p56, %p57
      %p59 = scmp.ne.s32.totalorder %s47, %s48
      %p60 = scmp.eq.s32.totalorder %s17, 3
      %p61 = por %p59, %p60
      %p63 = scmp.ne.s32.totalorder %s48, %s62
      %p64 = scmp.eq.s32.totalorder %s17, 0
      %p65 = por %p63, %p64
      %s66 = ssub.s32 %s11, %s18
      %p67 = scmp.eq.s32.totalorder %s66, 0
      %s69 = sadd.s32 %s68, 1
      %s70 = scalar_select %p67, %s68, %s69
      %p73 = pneg %p67
      %p74 = scmp.eq.s32.totalorder %s11, 3
      %p75 = por %p73, %p74
      %p76 = scmp.ne.s32.totalorder %s68, %s71
      %p77 = scmp.eq.s32.totalorder %s11, 0
      %p78 = por %p76, %p77
      %p79 = scmp.ne.s32.totalorder %s68, %s71
      %p80 = scmp.eq.s32.totalorder %s16, 3
      %p81 = por %p79, %p80
      %p82 = scmp.ne.s32.totalorder %s71, %s72
      %p83 = scmp.eq.s32.totalorder %s16, 0
      %p84 = por %p82, %p83
      %p85 = scmp.ne.s32.totalorder %s71, %s72
      %p86 = scmp.eq.s32.totalorder %s17, 3
      %p87 = por %p85, %p86
      %p89 = scmp.ne.s32.totalorder %s72, %s88
      %p90 = scmp.eq.s32.totalorder %s17, 0
      %p91 = por %p89, %p90
      %p92 = scmp.le.s32.totalorder 1, %s11
      %p93 = scmp.lt.s32.totalorder %s11, 5
      %p94 = pnand %p92, %p93
      %p95 = pneg %p94
      // Predicated region
      $region9: #{decoder_forward.3} parent=5 // pred_check
        _
      $region10: #{decoder_forward.3} parent=5 // pred_check_branch
        %97 = sbr.rel (%p94) target = $region12
      $region11: #{decoder_forward.3} parent=5 // pred_region
        %s98 = ssub.s32 %s11, 1
        // Predicated region
        $region13: #{decoder_forward.3} parent=11 // pred_check
          %p99 = pneg %p58
        $region14: #{decoder_forward.3} parent=11 // pred_check_branch
          %101 = sbr.rel (%p99) target = $region16
        $region15: #{decoder_forward.3} parent=11 // pred_region
          _
        $region16: #{decoder_forward.3} parent=11 // pred_fallthru
          _
      $region12: #{decoder_forward.3} parent=5 // pred_fallthru
        _
      %p102 = scmp.lt.s32.totalorder %s11, 4
      // Predicated region
      $region17: #{decoder_forward.3} parent=5 // pred_check
        %p103 = pneg %p102
      $region18: #{decoder_forward.3} parent=5 // pred_check_branch
        %105 = sbr.rel (%p103) target = $region20
      $region19: #{decoder_forward.3} parent=5 // pred_region
        // Predicated region
        $region21: #{decoder_forward.3} parent=19 // pred_check
          %p106 = pneg %p31
        $region22: #{decoder_forward.3} parent=19 // pred_check_branch
          %108 = sbr.rel (%p106) target = $region24
        $region23: #{decoder_forward.3} parent=19 // pred_region
          %p109 = scmp.lt.s32.totalorder %s11, 3
          %s110 = scalar_select %p109, %s11, 3
          %s111 = smul.addr %s110, 8
          %s112 = scalar_lea.vmem %s0, %s111
        $region24: #{decoder_forward.3} parent=19 // pred_fallthru
          _
      $region20: #{decoder_forward.3} parent=5 // pred_fallthru
        _
      %p113 = scmp.le.s32.totalorder 1, %s11
      %p114 = scmp.lt.s32.totalorder %s11, 5
      %p115 = pnand %p113, %p114
      %p116 = pneg %p115
      // Predicated region
      $region25: #{decoder_forward.3} parent=5 // pred_check
        _
      $region26: #{decoder_forward.3} parent=5 // pred_check_branch
        %118 = sbr.rel (%p115) target = $region28
      $region27: #{decoder_forward.3} parent=5 // pred_region
        %s119 = ssub.s32 %s11, 1
        %p120 = scmp.lt.s32.totalorder %s16, 3
        %s121 = scalar_select %p120, %s16, 3
        %s122 = smul.addr %s121, 8
        %s123 = scalar_lea.vmem %s0, %s122
        %p124 = pneg %p37
        %p125 = pneg %p34
        %p126 = pneg %p58
        %p127 = pneg %p55
        %p128 = pneg %p84
        %p129 = pneg %p81
        %s130 = sand.u32 %s71, 1
        %s131 = scalar_lea.sflag [#allocation3], %s130
        %s132 = sand.u32 %s71, 1
        %s133 = smul.addr %s132, 8
        %s134 = scalar_lea.vmem [#allocation2], %s133
        %p135 = scmp.lt.s32.totalorder %s16, 3
        %s136 = scalar_select %p135, %s16, 3
        %s137 = smul.addr %s136, 8
        %s138 = scalar_lea.vmem %s0, %s137
        %v139 = vld [vmem:[%s138] sm:$0xff]
        %v140 = vld [vmem:[%s1] sm:$0xff]
        %142 = vset.pattern.permute.xlu0 0
        %143 = vperm.xlu0 %142, %v140
        %v144 = vpop.permute.xlu0 %143
        %v146 = vsub.f32 %v139, %v144
        %147 = vst [vmem:[%s134] sm:$0xff] %v146
        %s148 = sand.u32 %s71, 1
        %s149 = scalar_lea.sflag [#allocation3], %s148
        %s150 = sand.u32 %s71, 1
        %s151 = smul.addr %s150, 8
        %s152 = scalar_lea.vmem [#allocation2], %s151
        // Predicated region
        $region29: #{decoder_forward.3} parent=27 // pred_check
          %p153 = pneg %p81
        $region30: #{decoder_forward.3} parent=27 // pred_check_branch
          %155 = sbr.rel (%p153) target = $region32
        $region31: #{decoder_forward.3} parent=27 // pred_region
          %s157 = ssub.s32 128, 128
          %158 = vsyncadd %s149, %s157
          %s159 = smul.addr %s16, 128
          %s160 = scalar_lea.hbm %s2, %s159
          %s162 = sshll.u32 %s152, 4
          %s163 = int_to_ptr.vmem [resolvable:$true] %s162
          %165 = dma.vmem_to_hbm [thread:$0]  %s163, 128, %s160, %s149
        $region32: #{decoder_forward.3} parent=27 // pred_fallthru
          _
      $region28: #{decoder_forward.3} parent=5 // pred_fallthru
        _
      %p166 = scmp.le.s32.totalorder 2, %s11
      // Predicated region
      $region33: #{decoder_forward.3} parent=5 // pred_check
        %p167 = pneg %p166
      $region34: #{decoder_forward.3} parent=5 // pred_check_branch
        %169 = sbr.rel (%p167) target = $region36
      $region35: #{decoder_forward.3} parent=5 // pred_region
        %s170 = ssub.s32 %s11, 2
        // Predicated region
        $region37: #{decoder_forward.3} parent=35 // pred_check
          %p171 = pneg %p87
        $region38: #{decoder_forward.3} parent=35 // pred_check_branch
          %173 = sbr.rel (%p171) target = $region40
        $region39: #{decoder_forward.3} parent=35 // pred_region
          %s174 = sand.u32 %s72, 1
          %s175 = scalar_lea.sflag [#allocation3], %s174
          %s176 = sand.u32 %s72, 1
          %s177 = smul.addr %s176, 8
          %s178 = scalar_lea.vmem [#allocation2], %s177
          %179 = dma.done %s175, 128
        $region40: #{decoder_forward.3} parent=35 // pred_fallthru
          _
      $region36: #{decoder_forward.3} parent=5 // pred_fallthru
        _
    $region6: #{decoder_forward.3} parent=1 // loop_footer
      %s15 = sadd.s32 1, %s11
    $region7: #{decoder_forward.3} parent=1 // loop_footer_branch
      %10 = sbr.rel target = $region3
    $region8: #{decoder_forward.3} parent=1 // loop_exit
      _
    %180 = vsyncpa [#allocation3], 1
    %s181 = scalar_lea.sflag [#allocation3], 1
    %182 = vsyncpa %s181, 1

// kernel: decoder_forward.2
$region0: #{decoder_forward.2}
  #allocation0 [shape = 'u32[]', space=smem, size = 0x4, offset = 0x4, fixed_abs, tag = 'smem constant byte address 0x4 - core index']
  #allocation1 [shape = 'u32[144,128]{1,0:T(1,128)}', space=vmem, size = 0x12000, scoped, tag = 'internal scratch']
  #allocation2 [shape = 'f32[8,128]{1,0:T(8,128)}', space=vmem, size = 0x1000, scoped, tag = 'scratch operand']
  #allocation3 [shape = 'f32[8,1]{1,0:T(8,128)}', space=vmem, size = 0x1000, scoped, tag = 'scratch operand']
  #allocation4 [shape = 'f32[8,1]{1,0:T(8,128)}', space=vmem, size = 0x1000, scoped, tag = 'scratch operand']
  %s0 = inlined_call_operand.vmem [shape: bf16[8,128], index: 0, kind: input, shape index: {}]
  %s1 = inlined_call_operand.vmem [shape: bf16[8,128], index: 1, kind: input, shape index: {}]
  %s2 = inlined_call_operand.vmem [shape: f32[8,128], index: 2, kind: input, shape index: {}]
  %s3 = inlined_call_operand.hbm [shape: bf16[128,384], index: 3, kind: input, shape index: {}]
  %s4 = inlined_call_operand.hbm [shape: bf16[128,384], index: 4, kind: input, shape index: {}]
  %s5 = inlined_call_operand.hbm [shape: bf16[128,384], index: 5, kind: input, shape index: {}]
  %s6 = inlined_call_operand.vmem [shape: f32[1,384], index: 6, kind: input, shape index: {}]
  %s7 = inlined_call_operand.vmem [shape: f32[1,384], index: 7, kind: input, shape index: {}]
  %s8 = inlined_call_operand.hbm [shape: bf16[128,512], index: 8, kind: input, shape index: {}]
  %s9 = inlined_call_operand.hbm [shape: bf16[128,512], index: 9, kind: input, shape index: {}]
  %s10 = inlined_call_operand.hbm [shape: bf16[128,512], index: 10, kind: input, shape index: {}]
  %s11 = inlined_call_operand.vmem [shape: f32[1,512], index: 11, kind: input, shape index: {}]
  %s12 = inlined_call_operand.vmem [shape: f32[8,512], index: 12, kind: output, shape index: {0}]
  %s13 = inlined_call_operand.hbm [shape: f32[8,128], index: 13, kind: output, shape index: {1}]
  %s14 = inlined_call_operand.vmem [shape: f32[8,1], index: 14, kind: output, shape index: {2}]
  %15 = xla_tuple %s12, %s13, %s14
  %s16 = sld [smem:[#allocation0]]
  $region129: #{decoder_forward.2} parent=0
    _
  %s18 = ssub.s32 1, %s16
  %s19 = scalar_select 0, %s18, %s16
  $region1: #{decoder_forward.2} parent=0
    #allocation5 [shape = 'u8[98304]{0}', space=vmem, size = 0x18000, scoped, tag = 'input window, operand 3, single buffered']
    #allocation6 [shape = 's32[2]{0}', space=sflag, size = 0x8, scoped, tag = 'scoped memory for decoder_forward.2']
    #allocation7 [shape = 's32[2]{0}', space=sflag, size = 0x8, scoped, tag = 'scoped memory for decoder_forward.2']
    #allocation8 [shape = 'u8[98304]{0}', space=vmem, size = 0x18000, scoped, tag = 'input window, operand 4, single buffered']
    #allocation9 [shape = 's32[1]{0}', space=sflag, size = 0x4, scoped, tag = 'scoped memory for decoder_forward.2']
    #allocation10 [shape = 'u8[98304]{0}', space=vmem, size = 0x18000, scoped, tag = 'input window, operand 5, single buffered']
    #allocation11 [shape = 'u8[65536]{0}', space=vmem, size = 0x10000, scoped, tag = 'input window, operand 8']
    #allocation12 [shape = 's32[2]{0}', space=sflag, size = 0x8, scoped, tag = 'scoped memory for decoder_forward.2']
    #allocation13 [shape = 'u8[65536]{0}', space=vmem, size = 0x10000, scoped, tag = 'input window, operand 9']
    #allocation14 [shape = 'u8[65536]{0}', space=vmem, size = 0x10000, scoped, tag = 'input window, operand 10']
    #allocation15 [shape = 's32[2]{0}', space=sflag, size = 0x8, scoped, tag = 'scoped memory for decoder_forward.2']
    #allocation16 [shape = 'u8[4096]{0}', space=vmem, size = 0x1000, scoped, tag = 'output window, operand 1, single buffered']
    %20 = vsyncpa [#allocation6], 0
    %21 = vsyncpa [#allocation9], 0
    %22 = vsyncpa [#allocation12], 0
    %s23 = scalar_lea.sflag [#allocation12], 1
    %24 = vsyncpa %s23, 0
    %25 = vsyncpa [#allocation15], 0
    %s26 = scalar_lea.sflag [#allocation15], 1
    %27 = vsyncpa %s26, 0
    %28 = vsyncpa [#allocation7], 0
    loop: start=0, step=1, limit=6
    $region2: #{decoder_forward.2} parent=1 // loop_pre_header
      _
    $region3: #{decoder_forward.2} parent=1 // loop_header
      %s30 = sphi 0, %s34
      %p31 = scmp.ge.s32.totalorder %s30, 6
      %s38 = sphi 0, %s38
      %s40 = sphi 0, %s38
      %s41 = sphi 0, %s40
      %s55 = sphi 0, %s41
      %s59 = sphi 0, %s59
      %s61 = sphi 0, %s59
      %s62 = sphi 0, %s61
      %s76 = sphi 0, %s62
      %s80 = sphi 0, %s80
      %s82 = sphi 0, %s80
      %s83 = sphi 0, %s82
      %s97 = sphi 0, %s83
      %s101 = sphi 0, %s101
      %s103 = sphi 0, %s101
      %s104 = sphi 0, %s103
      %s118 = sphi 0, %s104
      %s122 = sphi 0, %s122
      %s124 = sphi 0, %s122
      %s125 = sphi 0, %s124
      %s139 = sphi 0, %s125
      %s143 = sphi 0, %s143
      %s145 = sphi 0, %s143
      %s146 = sphi 0, %s145
      %s160 = sphi 0, %s146
      %s164 = sphi 0, %s164
      %s166 = sphi 0, %s164
      %s167 = sphi 0, %s166
      %s181 = sphi 0, %s167
      %s185 = sphi 0, %s185
      %s187 = sphi 0, %s185
      %s188 = sphi 0, %s187
      %s202 = sphi 0, %s188
      %s208 = sphi 0, %s210
      %s211 = sphi 0, %s208
      %s212 = sphi 0, %s211
      %s228 = sphi 0, %s212
      %s234 = sphi 0, %s236
      %s237 = sphi 0, %s234
      %s238 = sphi 0, %s237
      %s254 = sphi 0, %s238
      %s260 = sphi 0, %s262
      %s263 = sphi 0, %s260
      %s264 = sphi 0, %s263
      %s280 = sphi 0, %s264
      %s286 = sphi 0, %s288
      %s289 = sphi 0, %s286
      %s290 = sphi 0, %s289
      %s306 = sphi 0, %s290
      %s312 = sphi 0, %s314
      %s315 = sphi 0, %s312
      %s316 = sphi 0, %s315
      %s332 = sphi 0, %s316
      %s336 = sphi 0, %s336
      %s338 = sphi 0, %s336
      %s339 = sphi 0, %s338
      %s353 = sphi 0, %s339
      %s357 = sphi 0, %s357
      %s359 = sphi 0, %s357
      %s360 = sphi 0, %s359
      %s374 = sphi 0, %s360
    $region4: #{decoder_forward.2} parent=1 // loop_header_branch
      %33 = sbr.rel (%p31) target = $region8
    $region5: #{decoder_forward.2} parent=1 // loop_body
      %s35 = ssub.s32 %s30, 1
      %s36 = ssub.s32 %s30, 2
      %s37 = sadd.s32 %s30, 1
      %s39 = sadd.s32 %s38, 1
      %p42 = scmp.eq.s32.totalorder %s30, 3
      %p43 = scmp.ne.s32.totalorder %s38, %s40
      %p44 = scmp.eq.s32.totalorder %s30, 0
      %p45 = por %p43, %p44
      %p46 = scmp.ne.s32.totalorder %s38, %s40
      %p47 = scmp.eq.s32.totalorder %s35, 3
      %p48 = por %p46, %p47
      %p49 = scmp.ne.s32.totalorder %s40, %s41
      %p50 = scmp.eq.s32.totalorder %s35, 0
      %p51 = por %p49, %p50
      %p52 = scmp.ne.s32.totalorder %s40, %s41
      %p53 = scmp.eq.s32.totalorder %s36, 3
      %p54 = por %p52, %p53
      %p56 = scmp.ne.s32.totalorder %s41, %s55
      %p57 = scmp.eq.s32.totalorder %s36, 0
      %p58 = por %p56, %p57
      %s60 = sadd.s32 %s59, 1
      %p63 = scmp.eq.s32.totalorder %s30, 3
      %p64 = scmp.ne.s32.totalorder %s59, %s61
      %p65 = scmp.eq.s32.totalorder %s30, 0
      %p66 = por %p64, %p65
      %p67 = scmp.ne.s32.totalorder %s59, %s61
      %p68 = scmp.eq.s32.totalorder %s35, 3
      %p69 = por %p67, %p68
      %p70 = scmp.ne.s32.totalorder %s61, %s62
      %p71 = scmp.eq.s32.totalorder %s35, 0
      %p72 = por %p70, %p71
      %p73 = scmp.ne.s32.totalorder %s61, %s62
      %p74 = scmp.eq.s32.totalorder %s36, 3
      %p75 = por %p73, %p74
      %p77 = scmp.ne.s32.totalorder %s62, %s76
      %p78 = scmp.eq.s32.totalorder %s36, 0
      %p79 = por %p77, %p78
      %s81 = sadd.s32 %s80, 1
      %p84 = scmp.eq.s32.totalorder %s30, 3
      %p85 = scmp.ne.s32.totalorder %s80, %s82
      %p86 = scmp.eq.s32.totalorder %s30, 0
      %p87 = por %p85, %p86
      %p88 = scmp.ne.s32.totalorder %s80, %s82
      %p89 = scmp.eq.s32.totalorder %s35, 3
      %p90 = por %p88, %p89
      %p91 = scmp.ne.s32.totalorder %s82, %s83
      %p92 = scmp.eq.s32.totalorder %s35, 0
      %p93 = por %p91, %p92
      %p94 = scmp.ne.s32.totalorder %s82, %s83
      %p95 = scmp.eq.s32.totalorder %s36, 3
      %p96 = por %p94, %p95
      %p98 = scmp.ne.s32.totalorder %s83, %s97
      %p99 = scmp.eq.s32.totalorder %s36, 0
      %p100 = por %p98, %p99
      %s102 = sadd.s32 %s101, 1
      %p105 = scmp.eq.s32.totalorder %s30, 3
      %p106 = scmp.ne.s32.totalorder %s101, %s103
      %p107 = scmp.eq.s32.totalorder %s30, 0
      %p108 = por %p106, %p107
      %p109 = scmp.ne.s32.totalorder %s101, %s103
      %p110 = scmp.eq.s32.totalorder %s35, 3
      %p111 = por %p109, %p110
      %p112 = scmp.ne.s32.totalorder %s103, %s104
      %p113 = scmp.eq.s32.totalorder %s35, 0
      %p114 = por %p112, %p113
      %p115 = scmp.ne.s32.totalorder %s103, %s104
      %p116 = scmp.eq.s32.totalorder %s36, 3
      %p117 = por %p115, %p116
      %p119 = scmp.ne.s32.totalorder %s104, %s118
      %p120 = scmp.eq.s32.totalorder %s36, 0
      %p121 = por %p119, %p120
      %s123 = sadd.s32 %s122, 1
      %p126 = scmp.eq.s32.totalorder %s30, 3
      %p127 = scmp.ne.s32.totalorder %s122, %s124
      %p128 = scmp.eq.s32.totalorder %s30, 0
      %p129 = por %p127, %p128
      %p130 = scmp.ne.s32.totalorder %s122, %s124
      %p131 = scmp.eq.s32.totalorder %s35, 3
      %p132 = por %p130, %p131
      %p133 = scmp.ne.s32.totalorder %s124, %s125
      %p134 = scmp.eq.s32.totalorder %s35, 0
      %p135 = por %p133, %p134
      %p136 = scmp.ne.s32.totalorder %s124, %s125
      %p137 = scmp.eq.s32.totalorder %s36, 3
      %p138 = por %p136, %p137
      %p140 = scmp.ne.s32.totalorder %s125, %s139
      %p141 = scmp.eq.s32.totalorder %s36, 0
      %p142 = por %p140, %p141
      %s144 = sadd.s32 %s143, 1
      %p147 = scmp.eq.s32.totalorder %s30, 3
      %p148 = scmp.ne.s32.totalorder %s143, %s145
      %p149 = scmp.eq.s32.totalorder %s30, 0
      %p150 = por %p148, %p149
      %p151 = scmp.ne.s32.totalorder %s143, %s145
      %p152 = scmp.eq.s32.totalorder %s35, 3
      %p153 = por %p151, %p152
      %p154 = scmp.ne.s32.totalorder %s145, %s146
      %p155 = scmp.eq.s32.totalorder %s35, 0
      %p156 = por %p154, %p155
      %p157 = scmp.ne.s32.totalorder %s145, %s146
      %p158 = scmp.eq.s32.totalorder %s36, 3
      %p159 = por %p157, %p158
      %p161 = scmp.ne.s32.totalorder %s146, %s160
      %p162 = scmp.eq.s32.totalorder %s36, 0
      %p163 = por %p161, %p162
      %s165 = sadd.s32 %s164, 1
      %p168 = scmp.eq.s32.totalorder %s30, 3
      %p169 = scmp.ne.s32.totalorder %s164, %s166
      %p170 = scmp.eq.s32.totalorder %s30, 0
      %p171 = por %p169, %p170
      %p172 = scmp.ne.s32.totalorder %s164, %s166
      %p173 = scmp.eq.s32.totalorder %s35, 3
      %p174 = por %p172, %p173
      %p175 = scmp.ne.s32.totalorder %s166, %s167
      %p176 = scmp.eq.s32.totalorder %s35, 0
      %p177 = por %p175, %p176
      %p178 = scmp.ne.s32.totalorder %s166, %s167
      %p179 = scmp.eq.s32.totalorder %s36, 3
      %p180 = por %p178, %p179
      %p182 = scmp.ne.s32.totalorder %s167, %s181
      %p183 = scmp.eq.s32.totalorder %s36, 0
      %p184 = por %p182, %p183
      %s186 = sadd.s32 %s185, 1
      %p189 = scmp.eq.s32.totalorder %s30, 3
      %p190 = scmp.ne.s32.totalorder %s185, %s187
      %p191 = scmp.eq.s32.totalorder %s30, 0
      %p192 = por %p190, %p191
      %p193 = scmp.ne.s32.totalorder %s185, %s187
      %p194 = scmp.eq.s32.totalorder %s35, 3
      %p195 = por %p193, %p194
      %p196 = scmp.ne.s32.totalorder %s187, %s188
      %p197 = scmp.eq.s32.totalorder %s35, 0
      %p198 = por %p196, %p197
      %p199 = scmp.ne.s32.totalorder %s187, %s188
      %p200 = scmp.eq.s32.totalorder %s36, 3
      %p201 = por %p199, %p200
      %p203 = scmp.ne.s32.totalorder %s188, %s202
      %p204 = scmp.eq.s32.totalorder %s36, 0
      %p205 = por %p203, %p204
      %s206 = ssub.s32 %s30, %s37
      %p207 = scmp.eq.s32.totalorder %s206, 0
      %s209 = sadd.s32 %s208, 1
      %s210 = scalar_select %p207, %s208, %s209
      %p213 = pneg %p207
      %p214 = scmp.eq.s32.totalorder %s30, 3
      %p215 = por %p213, %p214
      %p216 = scmp.ne.s32.totalorder %s208, %s211
      %p217 = scmp.eq.s32.totalorder %s30, 0
      %p218 = por %p216, %p217
      %p219 = scmp.ne.s32.totalorder %s208, %s211
      %p220 = scmp.eq.s32.totalorder %s35, 3
      %p221 = por %p219, %p220
      %p222 = scmp.ne.s32.totalorder %s211, %s212
      %p223 = scmp.eq.s32.totalorder %s35, 0
      %p224 = por %p222, %p223
      %p225 = scmp.ne.s32.totalorder %s211, %s212
      %p226 = scmp.eq.s32.totalorder %s36, 3
      %p227 = por %p225, %p226
      %p229 = scmp.ne.s32.totalorder %s212, %s228
      %p230 = scmp.eq.s32.totalorder %s36, 0
      %p231 = por %p229, %p230
      %s232 = ssub.s32 %s30, %s37
      %p233 = scmp.eq.s32.totalorder %s232, 0
      %s235 = sadd.s32 %s234, 1
      %s236 = scalar_select %p233, %s234, %s235
      %p239 = pneg %p233
      %p240 = scmp.eq.s32.totalorder %s30, 3
      %p241 = por %p239, %p240
      %p242 = scmp.ne.s32.totalorder %s234, %s237
      %p243 = scmp.eq.s32.totalorder %s30, 0
      %p244 = por %p242, %p243
      %p245 = scmp.ne.s32.totalorder %s234, %s237
      %p246 = scmp.eq.s32.totalorder %s35, 3
      %p247 = por %p245, %p246
      %p248 = scmp.ne.s32.totalorder %s237, %s238
      %p249 = scmp.eq.s32.totalorder %s35, 0
      %p250 = por %p248, %p249
      %p251 = scmp.ne.s32.totalorder %s237, %s238
      %p252 = scmp.eq.s32.totalorder %s36, 3
      %p253 = por %p251, %p252
      %p255 = scmp.ne.s32.totalorder %s238, %s254
      %p256 = scmp.eq.s32.totalorder %s36, 0
      %p257 = por %p255, %p256
      %s258 = ssub.s32 %s30, %s37
      %p259 = scmp.eq.s32.totalorder %s258, 0
      %s261 = sadd.s32 %s260, 1
      %s262 = scalar_select %p259, %s260, %s261
      %p265 = pneg %p259
      %p266 = scmp.eq.s32.totalorder %s30, 3
      %p267 = por %p265, %p266
      %p268 = scmp.ne.s32.totalorder %s260, %s263
      %p269 = scmp.eq.s32.totalorder %s30, 0
      %p270 = por %p268, %p269
      %p271 = scmp.ne.s32.totalorder %s260, %s263
      %p272 = scmp.eq.s32.totalorder %s35, 3
      %p273 = por %p271, %p272
      %p274 = scmp.ne.s32.totalorder %s263, %s264
      %p275 = scmp.eq.s32.totalorder %s35, 0
      %p276 = por %p274, %p275
      %p277 = scmp.ne.s32.totalorder %s263, %s264
      %p278 = scmp.eq.s32.totalorder %s36, 3
      %p279 = por %p277, %p278
      %p281 = scmp.ne.s32.totalorder %s264, %s280
      %p282 = scmp.eq.s32.totalorder %s36, 0
      %p283 = por %p281, %p282
      %s284 = ssub.s32 %s30, %s37
      %p285 = scmp.eq.s32.totalorder %s284, 0
      %s287 = sadd.s32 %s286, 1
      %s288 = scalar_select %p285, %s286, %s287
      %p291 = pneg %p285
      %p292 = scmp.eq.s32.totalorder %s30, 3
      %p293 = por %p291, %p292
      %p294 = scmp.ne.s32.totalorder %s286, %s289
      %p295 = scmp.eq.s32.totalorder %s30, 0
      %p296 = por %p294, %p295
      %p297 = scmp.ne.s32.totalorder %s286, %s289
      %p298 = scmp.eq.s32.totalorder %s35, 3
      %p299 = por %p297, %p298
      %p300 = scmp.ne.s32.totalorder %s289, %s290
      %p301 = scmp.eq.s32.totalorder %s35, 0
      %p302 = por %p300, %p301
      %p303 = scmp.ne.s32.totalorder %s289, %s290
      %p304 = scmp.eq.s32.totalorder %s36, 3
      %p305 = por %p303, %p304
      %p307 = scmp.ne.s32.totalorder %s290, %s306
      %p308 = scmp.eq.s32.totalorder %s36, 0
      %p309 = por %p307, %p308
      %s310 = ssub.s32 %s30, %s37
      %p311 = scmp.eq.s32.totalorder %s310, 0
      %s313 = sadd.s32 %s312, 1
      %s314 = scalar_select %p311, %s312, %s313
      %p317 = pneg %p311
      %p318 = scmp.eq.s32.totalorder %s30, 3
      %p319 = por %p317, %p318
      %p320 = scmp.ne.s32.totalorder %s312, %s315
      %p321 = scmp.eq.s32.totalorder %s30, 0
      %p322 = por %p320, %p321
      %p323 = scmp.ne.s32.totalorder %s312, %s315
      %p324 = scmp.eq.s32.totalorder %s35, 3
      %p325 = por %p323, %p324
      %p326 = scmp.ne.s32.totalorder %s315, %s316
      %p327 = scmp.eq.s32.totalorder %s35, 0
      %p328 = por %p326, %p327
      %p329 = scmp.ne.s32.totalorder %s315, %s316
      %p330 = scmp.eq.s32.totalorder %s36, 3
      %p331 = por %p329, %p330
      %p333 = scmp.ne.s32.totalorder %s316, %s332
      %p334 = scmp.eq.s32.totalorder %s36, 0
      %p335 = por %p333, %p334
      %s337 = sadd.s32 %s336, 1
      %p340 = scmp.eq.s32.totalorder %s30, 3
      %p341 = scmp.ne.s32.totalorder %s336, %s338
      %p342 = scmp.eq.s32.totalorder %s30, 0
      %p343 = por %p341, %p342
      %p344 = scmp.ne.s32.totalorder %s336, %s338
      %p345 = scmp.eq.s32.totalorder %s35, 3
      %p346 = por %p344, %p345
      %p347 = scmp.ne.s32.totalorder %s338, %s339
      %p348 = scmp.eq.s32.totalorder %s35, 0
      %p349 = por %p347, %p348
      %p350 = scmp.ne.s32.totalorder %s338, %s339
      %p351 = scmp.eq.s32.totalorder %s36, 3
      %p352 = por %p350, %p351
      %p354 = scmp.ne.s32.totalorder %s339, %s353
      %p355 = scmp.eq.s32.totalorder %s36, 0
      %p356 = por %p354, %p355
      %s358 = sadd.s32 %s357, 1
      %p361 = scmp.eq.s32.totalorder %s30, 3
      %p362 = scmp.ne.s32.totalorder %s357, %s359
      %p363 = scmp.eq.s32.totalorder %s30, 0
      %p364 = por %p362, %p363
      %p365 = scmp.ne.s32.totalorder %s357, %s359
      %p366 = scmp.eq.s32.totalorder %s35, 3
      %p367 = por %p365, %p366
      %p368 = scmp.ne.s32.totalorder %s359, %s360
      %p369 = scmp.eq.s32.totalorder %s35, 0
      %p370 = por %p368, %p369
      %p371 = scmp.ne.s32.totalorder %s359, %s360
      %p372 = scmp.eq.s32.totalorder %s36, 3
      %p373 = por %p371, %p372
      %p375 = scmp.ne.s32.totalorder %s360, %s374
      %p376 = scmp.eq.s32.totalorder %s36, 0
      %p377 = por %p375, %p376
      %p378 = scmp.le.s32.totalorder 1, %s30
      %p379 = scmp.lt.s32.totalorder %s30, 5
      %p380 = pnand %p378, %p379
      %p381 = pneg %p380
      // Predicated region
      $region9: #{decoder_forward.2} parent=5 // pred_check
        _
      $region10: #{decoder_forward.2} parent=5 // pred_check_branch
        %383 = sbr.rel (%p380) target = $region12
      $region11: #{decoder_forward.2} parent=5 // pred_region
        %s384 = ssub.s32 %s30, 1
        // Predicated region
        $region13: #{decoder_forward.2} parent=11 // pred_check
          %p385 = pneg %p51
        $region14: #{decoder_forward.2} parent=11 // pred_check_branch
          %387 = sbr.rel (%p385) target = $region16
        $region15: #{decoder_forward.2} parent=11 // pred_region
          _
        $region16: #{decoder_forward.2} parent=11 // pred_fallthru
          _
        // Predicated region
        $region17: #{decoder_forward.2} parent=11 // pred_check
          %p388 = pneg %p72
        $region18: #{decoder_forward.2} parent=11 // pred_check_branch
          %390 = sbr.rel (%p388) target = $region20
        $region19: #{decoder_forward.2} parent=11 // pred_region
          _
        $region20: #{decoder_forward.2} parent=11 // pred_fallthru
          _
        // Predicated region
        $region21: #{decoder_forward.2} parent=11 // pred_check
          %p391 = pneg %p93
        $region22: #{decoder_forward.2} parent=11 // pred_check_branch
          %393 = sbr.rel (%p391) target = $region24
        $region23: #{decoder_forward.2} parent=11 // pred_region
          _
        $region24: #{decoder_forward.2} parent=11 // pred_fallthru
          _
        // Predicated region
        $region25: #{decoder_forward.2} parent=11 // pred_check
          %p394 = pneg %p114
        $region26: #{decoder_forward.2} parent=11 // pred_check_branch
          %396 = sbr.rel (%p394) target = $region28
        $region27: #{decoder_forward.2} parent=11 // pred_region
          %s398 = ssub.s32 3072, 3072
          %399 = vsyncadd [#allocation6], %s398
          %s400 = sshll.u32 [#allocation5], 4
          %s401 = int_to_ptr.vmem [resolvable:$true] %s400
          %406 = dma.hbm_to_vmem [thread:$0]  %s3, 3072, %s401, [#allocation6], 192, 192, 12
        $region28: #{decoder_forward.2} parent=11 // pred_fallthru
          _
        // Predicated region
        $region29: #{decoder_forward.2} parent=11 // pred_check
          %p407 = pneg %p135
        $region30: #{decoder_forward.2} parent=11 // pred_check_branch
          %409 = sbr.rel (%p407) target = $region32
        $region31: #{decoder_forward.2} parent=11 // pred_region
          %s411 = ssub.s32 3072, 3072
          %412 = vsyncadd [#allocation9], %s411
          %s413 = sshll.u32 [#allocation8], 4
          %s414 = int_to_ptr.vmem [resolvable:$true] %s413
          %419 = dma.hbm_to_vmem [thread:$0]  %s4, 3072, %s414, [#allocation9], 192, 192, 12
        $region32: #{decoder_forward.2} parent=11 // pred_fallthru
          _
        // Predicated region
        $region33: #{decoder_forward.2} parent=11 // pred_check
          %p420 = pneg %p156
        $region34: #{decoder_forward.2} parent=11 // pred_check_branch
          %422 = sbr.rel (%p420) target = $region36
        $region35: #{decoder_forward.2} parent=11 // pred_region
          %s424 = ssub.s32 3072, 3072
          %425 = vsyncadd [#allocation9], %s424
          %s426 = sshll.u32 [#allocation10], 4
          %s427 = int_to_ptr.vmem [resolvable:$true] %s426
          %432 = dma.hbm_to_vmem [thread:$0]  %s5, 3072, %s427, [#allocation9], 192, 192, 12
        $region36: #{decoder_forward.2} parent=11 // pred_fallthru
          _
        // Predicated region
        $region37: #{decoder_forward.2} parent=11 // pred_check
          %p433 = pneg %p177
        $region38: #{decoder_forward.2} parent=11 // pred_check_branch
          %435 = sbr.rel (%p433) target = $region40
        $region39: #{decoder_forward.2} parent=11 // pred_region
          _
        $region40: #{decoder_forward.2} parent=11 // pred_fallthru
          _
        // Predicated region
        $region41: #{decoder_forward.2} parent=11 // pred_check
          %p436 = pneg %p198
        $region42: #{decoder_forward.2} parent=11 // pred_check_branch
          %438 = sbr.rel (%p436) target = $region44
        $region43: #{decoder_forward.2} parent=11 // pred_region
          _
        $region44: #{decoder_forward.2} parent=11 // pred_fallthru
          _
      $region12: #{decoder_forward.2} parent=5 // pred_fallthru
        _
      %p439 = scmp.lt.s32.totalorder %s30, 4
      // Predicated region
      $region45: #{decoder_forward.2} parent=5 // pred_check
        %p440 = pneg %p439
      $region46: #{decoder_forward.2} parent=5 // pred_check_branch
        %442 = sbr.rel (%p440) target = $region48
      $region47: #{decoder_forward.2} parent=5 // pred_region
        // Predicated region
        $region49: #{decoder_forward.2} parent=47 // pred_check
          %p443 = pneg %p218
        $region50: #{decoder_forward.2} parent=47 // pred_check_branch
          %445 = sbr.rel (%p443) target = $region52
        $region51: #{decoder_forward.2} parent=47 // pred_region
          %s446 = sand.u32 %s30, 1
          %s447 = scalar_lea.sflag [#allocation12], %s446
          %s448 = sand.u32 %s208, 1
          %s449 = smul.addr %s448, 64
          %s450 = scalar_lea.vmem [#allocation11], %s449
          %s452 = ssub.s32 1024, 1024
          %453 = vsyncadd %s447, %s452
          %s454 = smul.addr %s30, 64
          %s455 = scalar_lea.hbm %s8, %s454
          %s456 = sshll.u32 %s450, 4
          %s457 = int_to_ptr.vmem [resolvable:$true] %s456
          %462 = dma.hbm_to_vmem [thread:$0]  %s455, 1024, %s457, %s447, 256, 64, 4
        $region52: #{decoder_forward.2} parent=47 // pred_fallthru
          _
        // Predicated region
        $region53: #{decoder_forward.2} parent=47 // pred_check
          %p463 = pneg %p244
        $region54: #{decoder_forward.2} parent=47 // pred_check_branch
          %465 = sbr.rel (%p463) target = $region56
        $region55: #{decoder_forward.2} parent=47 // pred_region
          %s466 = sand.u32 %s30, 1
          %s467 = scalar_lea.sflag [#allocation12], %s466
          %s468 = sand.u32 %s234, 1
          %s469 = smul.addr %s468, 64
          %s470 = scalar_lea.vmem [#allocation13], %s469
          %s472 = ssub.s32 1024, 1024
          %473 = vsyncadd %s467, %s472
          %s474 = smul.addr %s30, 64
          %s475 = scalar_lea.hbm %s9, %s474
          %s476 = sshll.u32 %s470, 4
          %s477 = int_to_ptr.vmem [resolvable:$true] %s476
          %482 = dma.hbm_to_vmem [thread:$0]  %s475, 1024, %s477, %s467, 256, 64, 4
        $region56: #{decoder_forward.2} parent=47 // pred_fallthru
          _
        // Predicated region
        $region57: #{decoder_forward.2} parent=47 // pred_check
          %p483 = pneg %p270
        $region58: #{decoder_forward.2} parent=47 // pred_check_branch
          %485 = sbr.rel (%p483) target = $region60
        $region59: #{decoder_forward.2} parent=47 // pred_region
          %s486 = sand.u32 %s260, 1
          %s487 = scalar_lea.sflag [#allocation15], %s486
          %s488 = sand.u32 %s260, 1
          %s489 = smul.addr %s488, 64
          %s490 = scalar_lea.vmem [#allocation14], %s489
          %s492 = ssub.s32 1024, 1024
          %493 = vsyncadd %s487, %s492
          %s494 = smul.addr %s30, 64
          %s495 = scalar_lea.hbm %s10, %s494
          %s496 = sshll.u32 %s490, 4
          %s497 = int_to_ptr.vmem [resolvable:$true] %s496
          %502 = dma.hbm_to_vmem [thread:$0]  %s495, 1024, %s497, %s487, 256, 64, 4
        $region60: #{decoder_forward.2} parent=47 // pred_fallthru
          _
        // Predicated region
        $region61: #{decoder_forward.2} parent=47 // pred_check
          %p503 = pneg %p296
        $region62: #{decoder_forward.2} parent=47 // pred_check_branch
          %505 = sbr.rel (%p503) target = $region64
        $region63: #{decoder_forward.2} parent=47 // pred_region
          %p506 = scmp.lt.s32.totalorder %s30, 3
          %s507 = scalar_select %p506, %s30, 3
          %s508 = scalar_lea.vmem %s11, %s507
        $region64: #{decoder_forward.2} parent=47 // pred_fallthru
          _
      $region48: #{decoder_forward.2} parent=5 // pred_fallthru
        _
      %p509 = scmp.le.s32.totalorder 1, %s30
      %p510 = scmp.lt.s32.totalorder %s30, 5
      %p511 = pnand %p509, %p510
      %p512 = pneg %p511
      // Predicated region
      $region65: #{decoder_forward.2} parent=5 // pred_check
        _
      $region66: #{decoder_forward.2} parent=5 // pred_check_branch
        %514 = sbr.rel (%p511) target = $region68
      $region67: #{decoder_forward.2} parent=5 // pred_region
        %s515 = ssub.s32 %s30, 1
        // Predicated region
        $region69: #{decoder_forward.2} parent=67 // pred_check
          %p516 = pneg %p114
        $region70: #{decoder_forward.2} parent=67 // pred_check_branch
          %518 = sbr.rel (%p516) target = $region72
        $region71: #{decoder_forward.2} parent=67 // pred_region
          %519 = dma.done [#allocation6], 3072
        $region72: #{decoder_forward.2} parent=67 // pred_fallthru
          _
        // Predicated region
        $region73: #{decoder_forward.2} parent=67 // pred_check
          %p520 = pneg %p135
        $region74: #{decoder_forward.2} parent=67 // pred_check_branch
          %522 = sbr.rel (%p520) target = $region76
        $region75: #{decoder_forward.2} parent=67 // pred_region
          %523 = dma.done [#allocation9], 3072
        $region76: #{decoder_forward.2} parent=67 // pred_fallthru
          _
        // Predicated region
        $region77: #{decoder_forward.2} parent=67 // pred_check
          %p524 = pneg %p156
        $region78: #{decoder_forward.2} parent=67 // pred_check_branch
          %526 = sbr.rel (%p524) target = $region80
        $region79: #{decoder_forward.2} parent=67 // pred_region
          %527 = dma.done [#allocation9], 3072
        $region80: #{decoder_forward.2} parent=67 // pred_fallthru
          _
        %s528 = sand.u32 %s35, 1
        %s529 = scalar_lea.sflag [#allocation12], %s528
        %s530 = sand.u32 %s211, 1
        %s531 = smul.addr %s530, 64
        %s532 = scalar_lea.vmem [#allocation11], %s531
        // Predicated region
        $region81: #{decoder_forward.2} parent=67 // pred_check
          %p533 = pneg %p224
        $region82: #{decoder_forward.2} parent=67 // pred_check_branch
          %535 = sbr.rel (%p533) target = $region84
        $region83: #{decoder_forward.2} parent=67 // pred_region
          %536 = dma.done %s529, 1024
        $region84: #{decoder_forward.2} parent=67 // pred_fallthru
          _
        %s537 = sand.u32 %s35, 1
        %s538 = scalar_lea.sflag [#allocation12], %s537
        %s539 = sand.u32 %s237, 1
        %s540 = smul.addr %s539, 64
        %s541 = scalar_lea.vmem [#allocation13], %s540
        // Predicated region
        $region85: #{decoder_forward.2} parent=67 // pred_check
          %p542 = pneg %p250
        $region86: #{decoder_forward.2} parent=67 // pred_check_branch
          %544 = sbr.rel (%p542) target = $region88
        $region87: #{decoder_forward.2} parent=67 // pred_region
          %545 = dma.done %s538, 1024
        $region88: #{decoder_forward.2} parent=67 // pred_fallthru
          _
        %s546 = sand.u32 %s263, 1
        %s547 = scalar_lea.sflag [#allocation15], %s546
        %s548 = sand.u32 %s263, 1
        %s549 = smul.addr %s548, 64
        %s550 = scalar_lea.vmem [#allocation14], %s549
        // Predicated region
        $region89: #{decoder_forward.2} parent=67 // pred_check
          %p551 = pneg %p276
        $region90: #{decoder_forward.2} parent=67 // pred_check_branch
          %553 = sbr.rel (%p551) target = $region92
        $region91: #{decoder_forward.2} parent=67 // pred_region
          %554 = dma.done %s547, 1024
        $region92: #{decoder_forward.2} parent=67 // pred_fallthru
          _
        %p555 = pneg %p51
        %p556 = pneg %p48
        %p557 = pneg %p72
        %p558 = pneg %p69
        %p559 = pneg %p93
        %p560 = pneg %p90
        %p561 = pneg %p114
        %p562 = pneg %p111
        %p563 = pneg %p135
        %p564 = pneg %p132
        %p565 = pneg %p156
        %p566 = pneg %p153
        %p567 = pneg %p177
        %p568 = pneg %p174
        %p569 = pneg %p198
        %p570 = pneg %p195
        %s571 = sand.u32 %s35, 1
        %s572 = scalar_lea.sflag [#allocation12], %s571
        %s573 = sand.u32 %s211, 1
        %s574 = smul.addr %s573, 64
        %s575 = scalar_lea.vmem [#allocation11], %s574
        %p576 = pneg %p224
        %p577 = pneg %p221
        %s578 = sand.u32 %s35, 1
        %s579 = scalar_lea.sflag [#allocation12], %s578
        %s580 = sand.u32 %s237, 1
        %s581 = smul.addr %s580, 64
        %s582 = scalar_lea.vmem [#allocation13], %s581
        %p583 = pneg %p250
        %p584 = pneg %p247
        %s585 = sand.u32 %s263, 1
        %s586 = scalar_lea.sflag [#allocation15], %s585
        %s587 = sand.u32 %s263, 1
        %s588 = smul.addr %s587, 64
        %s589 = scalar_lea.vmem [#allocation14], %s588
        %p590 = pneg %p276
        %p591 = pneg %p273
        %p592 = scmp.lt.s32.totalorder %s35, 3
        %s593 = scalar_select %p592, %s35, 3
        %s594 = scalar_lea.vmem %s11, %s593
        %p595 = pneg %p302
        %p596 = pneg %p299
        %p597 = pneg %p328
        %p598 = pneg %p325
        %p599 = scmp.lt.s32.totalorder %s35, 3
        %s600 = scalar_select %p599, %s35, 3
        %s601 = smul.addr %s600, 8
        %s602 = scalar_lea.vmem %s12, %s601
        %p603 = pneg %p349
        %p604 = pneg %p346
        %p605 = pneg %p370
        %p606 = pneg %p367
        %p607 = scmp.lt.s32.totalorder %s35, 3
        %s608 = scalar_select %p607, %s35, 3
        %s609 = scalar_lea.vmem %s11, %s608
        %p610 = scmp.lt.s32.totalorder %s35, 3
        %s611 = scalar_select %p610, %s35, 3
        %s612 = smul.addr %s611, 8
        %s613 = scalar_lea.vmem %s12, %s612
        %v615 = vld [vmem:[%s0] sm:$0xf]
        %v616 = vld [vmem:[%s1] sm:$0xf]
        %p617 = scmp.eq.s32.totalorder %s35, 0
        // Predicated region
        $region93: #{decoder_forward.2} parent=67 // pred_check
          %p618 = pneg %p617
        $region94: #{decoder_forward.2} parent=67 // pred_check_branch
          %620 = sbr.rel (%p618) target = $region96
        $region95: #{decoder_forward.2} parent=67 // pred_region
          %v621 = vld [vmem:[%s2] sm:$0xff]
          %v622 = vld [vmem:[#allocation5] sm:$0xff]
          %v623 = vld [vmem:[#allocation5 + $0x8] sm:$0xf]
          %v624 = vld [vmem:[#allocation5 + $0xc] sm:$0xff]
          %v625 = vld [vmem:[#allocation5 + $0x14] sm:$0xf]
          %v626 = vld [vmem:[#allocation5 + $0x18] sm:$0xff]
          %v627 = vld [vmem:[#allocation5 + $0x20] sm:$0xf]
          %v628 = vld [vmem:[#allocation5 + $0x24] sm:$0xff]
          %v629 = vld [vmem:[#allocation5 + $0x2c] sm:$0xf]
          %v630 = vld [vmem:[#allocation5 + $0x30] sm:$0xff]
          %v631 = vld [vmem:[#allocation5 + $0x38] sm:$0xf]
          %v632 = vld [vmem:[#allocation5 + $0x3c] sm:$0xff]
          %v633 = vld [vmem:[#allocation5 + $0x44] sm:$0xf]
          %v634 = vld [vmem:[#allocation5 + $0x48] sm:$0xff]
          %v635 = vld [vmem:[#allocation5 + $0x50] sm:$0xf]
          %v636 = vld [vmem:[#allocation5 + $0x54] sm:$0xff]
          %v637 = vld [vmem:[#allocation5 + $0x5c] sm:$0xf]
          %v638 = vld [vmem:[#allocation5 + $0x60] sm:$0xff]
          %v639 = vld [vmem:[#allocation5 + $0x68] sm:$0xf]
          %v640 = vld [vmem:[#allocation5 + $0x6c] sm:$0xff]
          %v641 = vld [vmem:[#allocation5 + $0x74] sm:$0xf]
          %v642 = vld [vmem:[#allocation5 + $0x78] sm:$0xff]
          %v643 = vld [vmem:[#allocation5 + $0x80] sm:$0xf]
          %v644 = vld [vmem:[#allocation5 + $0x84] sm:$0xff]
          %v645 = vld [vmem:[#allocation5 + $0x8c] sm:$0xf]
          %v646 = vld [vmem:[#allocation5 + $0x90] sm:$0xff]
          %v647 = vld [vmem:[#allocation5 + $0x98] sm:$0xf]
          %v648 = vld [vmem:[#allocation5 + $0x9c] sm:$0xff]
          %v649 = vld [vmem:[#allocation5 + $0xa4] sm:$0xf]
          %v650 = vld [vmem:[#allocation5 + $0xa8] sm:$0xff]
          %v651 = vld [vmem:[#allocation5 + $0xb0] sm:$0xf]
          %v652 = vld [vmem:[#allocation5 + $0xb4] sm:$0xff]
          %v653 = vld [vmem:[#allocation5 + $0xbc] sm:$0xf]
          %v654 = vld [vmem:[#allocation8] sm:$0xff]
          %v655 = vld [vmem:[#allocation8 + $0x8] sm:$0xf]
          %v656 = vld [vmem:[#allocation8 + $0xc] sm:$0xff]
          %v657 = vld [vmem:[#allocation8 + $0x14] sm:$0xf]
          %v658 = vld [vmem:[#allocation8 + $0x18] sm:$0xff]
          %v659 = vld [vmem:[#allocation8 + $0x20] sm:$0xf]
          %v660 = vld [vmem:[#allocation8 + $0x24] sm:$0xff]
          %v661 = vld [vmem:[#allocation8 + $0x2c] sm:$0xf]
          %v662 = vld [vmem:[#allocation8 + $0x30] sm:$0xff]
          %v663 = vld [vmem:[#allocation8 + $0x38] sm:$0xf]
          %v664 = vld [vmem:[#allocation8 + $0x3c] sm:$0xff]
          %v665 = vld [vmem:[#allocation8 + $0x44] sm:$0xf]
          %v666 = vld [vmem:[#allocation8 + $0x48] sm:$0xff]
          %v667 = vld [vmem:[#allocation8 + $0x50] sm:$0xf]
          %v668 = vld [vmem:[#allocation8 + $0x54] sm:$0xff]
          %v669 = vld [vmem:[#allocation8 + $0x5c] sm:$0xf]
          %v670 = vld [vmem:[#allocation8 + $0x60] sm:$0xff]
          %v671 = vld [vmem:[#allocation8 + $0x68] sm:$0xf]
          %v672 = vld [vmem:[#allocation8 + $0x6c] sm:$0xff]
          %v673 = vld [vmem:[#allocation8 + $0x74] sm:$0xf]
          %v674 = vld [vmem:[#allocation8 + $0x78] sm:$0xff]
          %v675 = vld [vmem:[#allocation8 + $0x80] sm:$0xf]
          %v676 = vld [vmem:[#allocation8 + $0x84] sm:$0xff]
          %v677 = vld [vmem:[#allocation8 + $0x8c] sm:$0xf]
          %v678 = vld [vmem:[#allocation8 + $0x90] sm:$0xff]
          %v679 = vld [vmem:[#allocation8 + $0x98] sm:$0xf]
          %v680 = vld [vmem:[#allocation8 + $0x9c] sm:$0xff]
          %v681 = vld [vmem:[#allocation8 + $0xa4] sm:$0xf]
          %v682 = vld [vmem:[#allocation8 + $0xa8] sm:$0xff]
          %v683 = vld [vmem:[#allocation8 + $0xb0] sm:$0xf]
          %v684 = vld [vmem:[#allocation8 + $0xb4] sm:$0xff]
          %v685 = vld [vmem:[#allocation8 + $0xbc] sm:$0xf]
          %v718 = vunpack.c.l.b16 %v654
          %v719 = vunpack.c.h.b16 %v654
          %v720 = vunpack.c.l.b16 %v655
          %v721 = vunpack.c.l.b16 %v656
          %v722 = vunpack.c.h.b16 %v656
          %v723 = vunpack.c.l.b16 %v657
          %v724 = vunpack.c.l.b16 %v658
          %v725 = vunpack.c.h.b16 %v658
          %v726 = vunpack.c.l.b16 %v659
          %v727 = vunpack.c.l.b16 %v660
          %v728 = vunpack.c.h.b16 %v660
          %v729 = vunpack.c.l.b16 %v661
          %v730 = vunpack.c.l.b16 %v662
          %v731 = vunpack.c.h.b16 %v662
          %v732 = vunpack.c.l.b16 %v663
          %v733 = vunpack.c.l.b16 %v664
          %v734 = vunpack.c.h.b16 %v664
          %v735 = vunpack.c.l.b16 %v665
          %v736 = vunpack.c.l.b16 %v666
          %v737 = vunpack.c.h.b16 %v666
          %v738 = vunpack.c.l.b16 %v667
          %v739 = vunpack.c.l.b16 %v668
          %v740 = vunpack.c.h.b16 %v668
          %v741 = vunpack.c.l.b16 %v669
          %v742 = vunpack.c.l.b16 %v670
          %v743 = vunpack.c.h.b16 %v670
          %v744 = vunpack.c.l.b16 %v671
          %v745 = vunpack.c.l.b16 %v672
          %v746 = vunpack.c.h.b16 %v672
          %v747 = vunpack.c.l.b16 %v673
          %v748 = vunpack.c.l.b16 %v674
          %v749 = vunpack.c.h.b16 %v674
          %v750 = vunpack.c.l.b16 %v675
          %v751 = vunpack.c.l.b16 %v676
          %v752 = vunpack.c.h.b16 %v676
          %v753 = vunpack.c.l.b16 %v677
          %v754 = vunpack.c.l.b16 %v678
          %v755 = vunpack.c.h.b16 %v678
          %v756 = vunpack.c.l.b16 %v679
          %v757 = vunpack.c.l.b16 %v680
          %v758 = vunpack.c.h.b16 %v680
          %v759 = vunpack.c.l.b16 %v681
          %v760 = vunpack.c.l.b16 %v682
          %v761 = vunpack.c.h.b16 %v682
          %v762 = vunpack.c.l.b16 %v683
          %v763 = vunpack.c.l.b16 %v684
          %v764 = vunpack.c.h.b16 %v684
          %v765 = vunpack.c.l.b16 %v685
          %v766 = vpack.c.b16 %v721, %v718
          %v767 = vpack.c.b16 %v722, %v719
          %v768 = vpack.c.b16 %v723, %v720
          %v769 = vpack.c.b16 %v727, %v724
          %v770 = vpack.c.b16 %v728, %v725
          %v771 = vpack.c.b16 %v729, %v726
          %v772 = vpack.c.b16 %v733, %v730
          %v773 = vpack.c.b16 %v734, %v731
          %v774 = vpack.c.b16 %v735, %v732
          %v775 = vpack.c.b16 %v739, %v736
          %v776 = vpack.c.b16 %v740, %v737
          %v777 = vpack.c.b16 %v741, %v738
          %v778 = vpack.c.b16 %v745, %v742
          %v779 = vpack.c.b16 %v746, %v743
          %v780 = vpack.c.b16 %v747, %v744
          %v781 = vpack.c.b16 %v751, %v748
          %v782 = vpack.c.b16 %v752, %v749
          %v783 = vpack.c.b16 %v753, %v750
          %v784 = vpack.c.b16 %v757, %v754
          %v785 = vpack.c.b16 %v758, %v755
          %v786 = vpack.c.b16 %v759, %v756
          %v787 = vpack.c.b16 %v763, %v760
          %v788 = vpack.c.b16 %v764, %v761
          %v789 = vpack.c.b16 %v765, %v762
          %814 = vmatprep.subr.bf16.mxu0 %v767
          %815 = vmatpush1.bf16.msra.mxu0 %v766
          %816 = vmatprep.subr.bf16.mxu0 %v770
          %817 = vmatpush1.bf16.msra.mxu0 %v769
          %818 = vmatprep.subr.bf16.mxu0 %v773
          %819 = vmatpush1.bf16.msra.mxu0 %v772
          %820 = vmatprep.subr.bf16.mxu0 %v776
          %821 = vmatpush1.bf16.msra.mxu0 %v775
          %822 = vmatprep.subr.bf16.mxu0 %v779
          %823 = vmatpush1.bf16.msra.mxu0 %v778
          %824 = vmatprep.subr.bf16.mxu0 %v782
          %825 = vmatpush1.bf16.msra.mxu0 %v781
          %826 = vmatprep.subr.bf16.mxu0 %v785
          %827 = vmatpush1.bf16.msra.mxu0 %v784
          %828 = vmatprep.subr.bf16.mxu0 %v788
          %829 = vmatpush1.bf16.msra.mxu0 %v787
          %830 = vmatprep.subr.bf16.mxu0 0
          %831 = vmatpush1.bf16.msra.mxu0 0
          %832 = vmatprep.subr.bf16.mxu0 0
          %833 = vmatpush1.bf16.msra.mxu0 0
          %834 = vmatprep.subr.bf16.mxu0 0
          %835 = vmatpush1.bf16.msra.mxu0 0
          %836 = vmatprep.subr.bf16.mxu0 0
          %837 = vmatpush1.bf16.msra.mxu0 0
          %838 = vmatprep.subr.bf16.mxu0 0
          %839 = vmatpush1.bf16.msra.mxu0 0
          %840 = vmatprep.subr.bf16.mxu0 0
          %841 = vmatpush1.bf16.msra.mxu0 0
          %842 = vmatprep.subr.bf16.mxu0 0
          %843 = vmatpush1.bf16.msra.mxu0 0
          %844 = vmatprep.subr.bf16.mxu0 0
          %845 = vmatpush1.bf16.msra.mxu0 0
          %846 = vmatprep.mubr.bf16.mxu0 0
          %847 = vmatmul.mubr.bf16.gmra.mrb[0].mxu0 %v616
          %v848 = vpop.f32.mrb[0].mxu0
          %v849 = vadd.f32 0.0, %v848
          %v850 = vpop.f32.mrb[0].mxu0
          %v851 = vadd.f32 0.0, %v850
          %v852 = vpop.f32.mrb[0].mxu0
          %v853 = vpop.f32.mrb[0].mxu0
          %854 = vdwg.mxu0
          %855 = vmatprep.subr.bf16.mxu0 0
          %856 = vmatpush1.bf16.msra.mxu0 %v768
          %857 = vmatprep.subr.bf16.mxu0 0
          %858 = vmatpush1.bf16.msra.mxu0 %v771
          %859 = vmatprep.subr.bf16.mxu0 0
          %860 = vmatpush1.bf16.msra.mxu0 %v774
          %861 = vmatprep.subr.bf16.mxu0 0
          %862 = vmatpush1.bf16.msra.mxu0 %v777
          %863 = vmatprep.subr.bf16.mxu0 0
          %864 = vmatpush1.bf16.msra.mxu0 %v780
          %865 = vmatprep.subr.bf16.mxu0 0
          %866 = vmatpush1.bf16.msra.mxu0 %v783
          %867 = vmatprep.subr.bf16.mxu0 0
          %868 = vmatpush1.bf16.msra.mxu0 %v786
          %869 = vmatprep.subr.bf16.mxu0 0
          %870 = vmatpush1.bf16.msra.mxu0 %v789
          %871 = vmatprep.subr.bf16.mxu0 0
          %872 = vmatpush1.bf16.msra.mxu0 0
          %873 = vmatprep.subr.bf16.mxu0 0
          %874 = vmatpush1.bf16.msra.mxu0 0
          %875 = vmatprep.subr.bf16.mxu0 0
          %876 = vmatpush1.bf16.msra.mxu0 0
          %877 = vmatprep.subr.bf16.mxu0 0
          %878 = vmatpush1.bf16.msra.mxu0 0
          %879 = vmatprep.subr.bf16.mxu0 0
          %880 = vmatpush1.bf16.msra.mxu0 0
          %881 = vmatprep.subr.bf16.mxu0 0
          %882 = vmatpush1.bf16.msra.mxu0 0
          %883 = vmatprep.subr.bf16.mxu0 0
          %884 = vmatpush1.bf16.msra.mxu0 0
          %885 = vmatprep.subr.bf16.mxu0 0
          %886 = vmatpush1.bf16.msra.mxu0 0
          %887 = vmatprep.mubr.bf16.mxu0 0
          %888 = vmatmul.mubr.bf16.gmra.mrb[0].mxu0 %v616
          %v889 = vpop.f32.mrb[0].mxu0
          %v890 = vadd.f32 0.0, %v889
          %v891 = vpop.f32.mrb[0].mxu0
          %v892 = vpop.f32.mrb[0].mxu0
          %v893 = vpop.f32.mrb[0].mxu0
          %894 = vdwg.mxu0
          %v927 = vunpack.c.l.b16 %v622
          %v928 = vunpack.c.h.b16 %v622
          %v929 = vunpack.c.l.b16 %v623
          %v930 = vunpack.c.l.b16 %v624
          %v931 = vunpack.c.h.b16 %v624
          %v932 = vunpack.c.l.b16 %v625
          %v933 = vunpack.c.l.b16 %v626
          %v934 = vunpack.c.h.b16 %v626
          %v935 = vunpack.c.l.b16 %v627
          %v936 = vunpack.c.l.b16 %v628
          %v937 = vunpack.c.h.b16 %v628
          %v938 = vunpack.c.l.b16 %v629
          %v939 = vunpack.c.l.b16 %v630
          %v940 = vunpack.c.h.b16 %v630
          %v941 = vunpack.c.l.b16 %v631
          %v942 = vunpack.c.l.b16 %v632
          %v943 = vunpack.c.h.b16 %v632
          %v944 = vunpack.c.l.b16 %v633
          %v945 = vunpack.c.l.b16 %v634
          %v946 = vunpack.c.h.b16 %v634
          %v947 = vunpack.c.l.b16 %v635
          %v948 = vunpack.c.l.b16 %v636
          %v949 = vunpack.c.h.b16 %v636
          %v950 = vunpack.c.l.b16 %v637
          %v951 = vunpack.c.l.b16 %v638
          %v952 = vunpack.c.h.b16 %v638
          %v953 = vunpack.c.l.b16 %v639
          %v954 = vunpack.c.l.b16 %v640
          %v955 = vunpack.c.h.b16 %v640
          %v956 = vunpack.c.l.b16 %v641
          %v957 = vunpack.c.l.b16 %v642
          %v958 = vunpack.c.h.b16 %v642
          %v959 = vunpack.c.l.b16 %v643
          %v960 = vunpack.c.l.b16 %v644
          %v961 = vunpack.c.h.b16 %v644
          %v962 = vunpack.c.l.b16 %v645
          %v963 = vunpack.c.l.b16 %v646
          %v964 = vunpack.c.h.b16 %v646
          %v965 = vunpack.c.l.b16 %v647
          %v966 = vunpack.c.l.b16 %v648
          %v967 = vunpack.c.h.b16 %v648
          %v968 = vunpack.c.l.b16 %v649
          %v969 = vunpack.c.l.b16 %v650
          %v970 = vunpack.c.h.b16 %v650
          %v971 = vunpack.c.l.b16 %v651
          %v972 = vunpack.c.l.b16 %v652
          %v973 = vunpack.c.h.b16 %v652
          %v974 = vunpack.c.l.b16 %v653
          %v975 = vpack.c.b16 %v930, %v927
          %v976 = vpack.c.b16 %v931, %v928
          %v977 = vpack.c.b16 %v932, %v929
          %v978 = vpack.c.b16 %v936, %v933
          %v979 = vpack.c.b16 %v937, %v934
          %v980 = vpack.c.b16 %v938, %v935
          %v981 = vpack.c.b16 %v942, %v939
          %v982 = vpack.c.b16 %v943, %v940
          %v983 = vpack.c.b16 %v944, %v941
          %v984 = vpack.c.b16 %v948, %v945
          %v985 = vpack.c.b16 %v949, %v946
          %v986 = vpack.c.b16 %v950, %v947
          %v987 = vpack.c.b16 %v954, %v951
          %v988 = vpack.c.b16 %v955, %v952
          %v989 = vpack.c.b16 %v956, %v953
          %v990 = vpack.c.b16 %v960, %v957
          %v991 = vpack.c.b16 %v961, %v958
          %v992 = vpack.c.b16 %v962, %v959
          %v993 = vpack.c.b16 %v966, %v963
          %v994 = vpack.c.b16 %v967, %v964
          %v995 = vpack.c.b16 %v968, %v965
          %v996 = vpack.c.b16 %v972, %v969
          %v997 = vpack.c.b16 %v973, %v970
          %v998 = vpack.c.b16 %v974, %v971
          %1023 = vmatprep.subr.bf16.mxu0 %v976
          %1024 = vmatpush1.bf16.msra.mxu0 %v975
          %1025 = vmatprep.subr.bf16.mxu0 %v979
          %1026 = vmatpush1.bf16.msra.mxu0 %v978
          %1027 = vmatprep.subr.bf16.mxu0 %v982
          %1028 = vmatpush1.bf16.msra.mxu0 %v981
          %1029 = vmatprep.subr.bf16.mxu0 %v985
          %1030 = vmatpush1.bf16.msra.mxu0 %v984
          %1031 = vmatprep.subr.bf16.mxu0 %v988
          %1032 = vmatpush1.bf16.msra.mxu0 %v987
          %1033 = vmatprep.subr.bf16.mxu0 %v991
          %1034 = vmatpush1.bf16.msra.mxu0 %v990
          %1035 = vmatprep.subr.bf16.mxu0 %v994
          %1036 = vmatpush1.bf16.msra.mxu0 %v993
          %1037 = vmatprep.subr.bf16.mxu0 %v997
          %1038 = vmatpush1.bf16.msra.mxu0 %v996
          %1039 = vmatprep.subr.bf16.mxu0 0
          %1040 = vmatpush1.bf16.msra.mxu0 0
          %1041 = vmatprep.subr.bf16.mxu0 0
          %1042 = vmatpush1.bf16.msra.mxu0 0
          %1043 = vmatprep.subr.bf16.mxu0 0
          %1044 = vmatpush1.bf16.msra.mxu0 0
          %1045 = vmatprep.subr.bf16.mxu0 0
          %1046 = vmatpush1.bf16.msra.mxu0 0
          %1047 = vmatprep.subr.bf16.mxu0 0
          %1048 = vmatpush1.bf16.msra.mxu0 0
          %1049 = vmatprep.subr.bf16.mxu0 0
          %1050 = vmatpush1.bf16.msra.mxu0 0
          %1051 = vmatprep.subr.bf16.mxu0 0
          %1052 = vmatpush1.bf16.msra.mxu0 0
          %1053 = vmatprep.subr.bf16.mxu0 0
          %1054 = vmatpush1.bf16.msra.mxu0 0
          %1055 = vmatprep.mubr.bf16.mxu0 0
          %1056 = vmatmul.mubr.bf16.gmra.mrb[0].mxu0 %v615
          %v1057 = vpop.f32.mrb[0].mxu0
          %v1058 = vadd.f32 %v849, %v1057
          %v1059 = vpop.f32.mrb[0].mxu0
          %v1060 = vadd.f32 %v851, %v1059
          %v1061 = vpop.f32.mrb[0].mxu0
          %v1062 = vpop.f32.mrb[0].mxu0
          %1063 = vdwg.mxu0
          %1064 = vmatprep.subr.bf16.mxu0 0
          %1065 = vmatpush1.bf16.msra.mxu0 %v977
          %1066 = vmatprep.subr.bf16.mxu0 0
          %1067 = vmatpush1.bf16.msra.mxu0 %v980
          %1068 = vmatprep.subr.bf16.mxu0 0
          %1069 = vmatpush1.bf16.msra.mxu0 %v983
          %1070 = vmatprep.subr.bf16.mxu0 0
          %1071 = vmatpush1.bf16.msra.mxu0 %v986
          %1072 = vmatprep.subr.bf16.mxu0 0
          %1073 = vmatpush1.bf16.msra.mxu0 %v989
          %1074 = vmatprep.subr.bf16.mxu0 0
          %1075 = vmatpush1.bf16.msra.mxu0 %v992
          %1076 = vmatprep.subr.bf16.mxu0 0
          %1077 = vmatpush1.bf16.msra.mxu0 %v995
          %1078 = vmatprep.subr.bf16.mxu0 0
          %1079 = vmatpush1.bf16.msra.mxu0 %v998
          %1080 = vmatprep.subr.bf16.mxu0 0
          %1081 = vmatpush1.bf16.msra.mxu0 0
          %1082 = vmatprep.subr.bf16.mxu0 0
          %1083 = vmatpush1.bf16.msra.mxu0 0
          %1084 = vmatprep.subr.bf16.mxu0 0
          %1085 = vmatpush1.bf16.msra.mxu0 0
          %1086 = vmatprep.subr.bf16.mxu0 0
          %1087 = vmatpush1.bf16.msra.mxu0 0
          %1088 = vmatprep.subr.bf16.mxu0 0
          %1089 = vmatpush1.bf16.msra.mxu0 0
          %1090 = vmatprep.subr.bf16.mxu0 0
          %1091 = vmatpush1.bf16.msra.mxu0 0
          %1092 = vmatprep.subr.bf16.mxu0 0
          %1093 = vmatpush1.bf16.msra.mxu0 0
          %1094 = vmatprep.subr.bf16.mxu0 0
          %1095 = vmatpush1.bf16.msra.mxu0 0
          %1096 = vmatprep.mubr.bf16.mxu0 0
          %1097 = vmatmul.mubr.bf16.gmra.mrb[0].mxu0 %v615
          %v1098 = vpop.f32.mrb[0].mxu0
          %v1099 = vadd.f32 %v890, %v1098
          %v1100 = vpop.f32.mrb[0].mxu0
          %v1101 = vpop.f32.mrb[0].mxu0
          %v1102 = vpop.f32.mrb[0].mxu0
          %1103 = vdwg.mxu0
          %v1104 = vld [vmem:[%s6] sm:$0x7]
          %v1106 = vlaneseq
          %v1107 = vshrl.u32 %v1106, 7
          %v1108 = vsub.s32 0, %v1107
          %v1109 = vrot.slane %v1104, %v1108
          %v1110 = vlaneseq
          %v1111 = vshrl.u32 %v1110, 7
          %v1112 = vsub.s32 1, %v1111
          %v1113 = vrot.slane %v1104, %v1112
          %v1114 = vlaneseq
          %v1115 = vshrl.u32 %v1114, 7
          %v1116 = vsub.s32 2, %v1115
          %v1117 = vrot.slane %v1104, %v1116
          %v1121 = vadd.f32 %v1058, %v1109
          %v1122 = vadd.f32 %v1060, %v1113
          %v1123 = vadd.f32 %v1099, %v1117
          %v1124 = vpack.c.bf16 %v621, %v621
          %v1125 = vld [vmem:[#allocation10] sm:$0xff]
          %v1126 = vld [vmem:[#allocation10 + $0x8] sm:$0xf]
          %v1127 = vld [vmem:[#allocation10 + $0xc] sm:$0xff]
          %v1128 = vld [vmem:[#allocation10 + $0x14] sm:$0xf]
          %v1129 = vld [vmem:[#allocation10 + $0x18] sm:$0xff]
          %v1130 = vld [vmem:[#allocation10 + $0x20] sm:$0xf]
          %v1131 = vld [vmem:[#allocation10 + $0x24] sm:$0xff]
          %v1132 = vld [vmem:[#allocation10 + $0x2c] sm:$0xf]
          %v1133 = vld [vmem:[#allocation10 + $0x30] sm:$0xff]
          %v1134 = vld [vmem:[#allocation10 + $0x38] sm:$0xf]
          %v1135 = vld [vmem:[#allocation10 + $0x3c] sm:$0xff]
          %v1136 = vld [vmem:[#allocation10 + $0x44] sm:$0xf]
          %v1137 = vld [vmem:[#allocation10 + $0x48] sm:$0xff]
          %v1138 = vld [vmem:[#allocation10 + $0x50] sm:$0xf]
          %v1139 = vld [vmem:[#allocation10 + $0x54] sm:$0xff]
          %v1140 = vld [vmem:[#allocation10 + $0x5c] sm:$0xf]
          %v1141 = vld [vmem:[#allocation10 + $0x60] sm:$0xff]
          %v1142 = vld [vmem:[#allocation10 + $0x68] sm:$0xf]
          %v1143 = vld [vmem:[#allocation10 + $0x6c] sm:$0xff]
          %v1144 = vld [vmem:[#allocation10 + $0x74] sm:$0xf]
          %v1145 = vld [vmem:[#allocation10 + $0x78] sm:$0xff]
          %v1146 = vld [vmem:[#allocation10 + $0x80] sm:$0xf]
          %v1147 = vld [vmem:[#allocation10 + $0x84] sm:$0xff]
          %v1148 = vld [vmem:[#allocation10 + $0x8c] sm:$0xf]
          %v1149 = vld [vmem:[#allocation10 + $0x90] sm:$0xff]
          %v1150 = vld [vmem:[#allocation10 + $0x98] sm:$0xf]
          %v1151 = vld [vmem:[#allocation10 + $0x9c] sm:$0xff]
          %v1152 = vld [vmem:[#allocation10 + $0xa4] sm:$0xf]
          %v1153 = vld [vmem:[#allocation10 + $0xa8] sm:$0xff]
          %v1154 = vld [vmem:[#allocation10 + $0xb0] sm:$0xf]
          %v1155 = vld [vmem:[#allocation10 + $0xb4] sm:$0xff]
          %v1156 = vld [vmem:[#allocation10 + $0xbc] sm:$0xf]
          %v1157 = vld [vmem:[%s7] sm:$0x7]
          %v1159 = vlaneseq
          %v1160 = vshrl.u32 %v1159, 7
          %v1161 = vsub.s32 0, %v1160
          %v1162 = vrot.slane %v1157, %v1161
          %v1163 = vlaneseq
          %v1164 = vshrl.u32 %v1163, 7
          %v1165 = vsub.s32 1, %v1164
          %v1166 = vrot.slane %v1157, %v1165
          %v1167 = vlaneseq
          %v1168 = vshrl.u32 %v1167, 7
          %v1169 = vsub.s32 2, %v1168
          %v1170 = vrot.slane %v1157, %v1169
          %v1206 = vunpack.c.l.b16 %v1125
          %v1207 = vunpack.c.h.b16 %v1125
          %v1208 = vunpack.c.l.b16 %v1126
          %v1209 = vunpack.c.l.b16 %v1127
          %v1210 = vunpack.c.h.b16 %v1127
          %v1211 = vunpack.c.l.b16 %v1128
          %v1212 = vunpack.c.l.b16 %v1129
          %v1213 = vunpack.c.h.b16 %v1129
          %v1214 = vunpack.c.l.b16 %v1130
          %v1215 = vunpack.c.l.b16 %v1131
          %v1216 = vunpack.c.h.b16 %v1131
          %v1217 = vunpack.c.l.b16 %v1132
          %v1218 = vunpack.c.l.b16 %v1133
          %v1219 = vunpack.c.h.b16 %v1133
          %v1220 = vunpack.c.l.b16 %v1134
          %v1221 = vunpack.c.l.b16 %v1135
          %v1222 = vunpack.c.h.b16 %v1135
          %v1223 = vunpack.c.l.b16 %v1136
          %v1224 = vunpack.c.l.b16 %v1137
          %v1225 = vunpack.c.h.b16 %v1137
          %v1226 = vunpack.c.l.b16 %v1138
          %v1227 = vunpack.c.l.b16 %v1139
          %v1228 = vunpack.c.h.b16 %v1139
          %v1229 = vunpack.c.l.b16 %v1140
          %v1230 = vunpack.c.l.b16 %v1141
          %v1231 = vunpack.c.h.b16 %v1141
          %v1232 = vunpack.c.l.b16 %v1142
          %v1233 = vunpack.c.l.b16 %v1143
          %v1234 = vunpack.c.h.b16 %v1143
          %v1235 = vunpack.c.l.b16 %v1144
          %v1236 = vunpack.c.l.b16 %v1145
          %v1237 = vunpack.c.h.b16 %v1145
          %v1238 = vunpack.c.l.b16 %v1146
          %v1239 = vunpack.c.l.b16 %v1147
          %v1240 = vunpack.c.h.b16 %v1147
          %v1241 = vunpack.c.l.b16 %v1148
          %v1242 = vunpack.c.l.b16 %v1149
          %v1243 = vunpack.c.h.b16 %v1149
          %v1244 = vunpack.c.l.b16 %v1150
          %v1245 = vunpack.c.l.b16 %v1151
          %v1246 = vunpack.c.h.b16 %v1151
          %v1247 = vunpack.c.l.b16 %v1152
          %v1248 = vunpack.c.l.b16 %v1153
          %v1249 = vunpack.c.h.b16 %v1153
          %v1250 = vunpack.c.l.b16 %v1154
          %v1251 = vunpack.c.l.b16 %v1155
          %v1252 = vunpack.c.h.b16 %v1155
          %v1253 = vunpack.c.l.b16 %v1156
          %v1254 = vpack.c.b16 %v1209, %v1206
          %v1255 = vpack.c.b16 %v1210, %v1207
          %v1256 = vpack.c.b16 %v1211, %v1208
          %v1257 = vpack.c.b16 %v1215, %v1212
          %v1258 = vpack.c.b16 %v1216, %v1213
          %v1259 = vpack.c.b16 %v1217, %v1214
          %v1260 = vpack.c.b16 %v1221, %v1218
          %v1261 = vpack.c.b16 %v1222, %v1219
          %v1262 = vpack.c.b16 %v1223, %v1220
          %v1263 = vpack.c.b16 %v1227, %v1224
          %v1264 = vpack.c.b16 %v1228, %v1225
          %v1265 = vpack.c.b16 %v1229, %v1226
          %v1266 = vpack.c.b16 %v1233, %v1230
          %v1267 = vpack.c.b16 %v1234, %v1231
          %v1268 = vpack.c.b16 %v1235, %v1232
          %v1269 = vpack.c.b16 %v1239, %v1236
          %v1270 = vpack.c.b16 %v1240, %v1237
          %v1271 = vpack.c.b16 %v1241, %v1238
          %v1272 = vpack.c.b16 %v1245, %v1242
          %v1273 = vpack.c.b16 %v1246, %v1243
          %v1274 = vpack.c.b16 %v1247, %v1244
          %v1275 = vpack.c.b16 %v1251, %v1248
          %v1276 = vpack.c.b16 %v1252, %v1249
          %v1277 = vpack.c.b16 %v1253, %v1250
          %1302 = vmatprep.subr.bf16.mxu0 %v1255
          %1303 = vmatpush1.bf16.msra.mxu0 %v1254
          %1304 = vmatprep.subr.bf16.mxu0 %v1258
          %1305 = vmatpush1.bf16.msra.mxu0 %v1257
          %1306 = vmatprep.subr.bf16.mxu0 %v1261
          %1307 = vmatpush1.bf16.msra.mxu0 %v1260
          %1308 = vmatprep.subr.bf16.mxu0 %v1264
          %1309 = vmatpush1.bf16.msra.mxu0 %v1263
          %1310 = vmatprep.subr.bf16.mxu0 %v1267
          %1311 = vmatpush1.bf16.msra.mxu0 %v1266
          %1312 = vmatprep.subr.bf16.mxu0 %v1270
          %1313 = vmatpush1.bf16.msra.mxu0 %v1269
          %1314 = vmatprep.subr.bf16.mxu0 %v1273
          %1315 = vmatpush1.bf16.msra.mxu0 %v1272
          %1316 = vmatprep.subr.bf16.mxu0 %v1276
          %1317 = vmatpush1.bf16.msra.mxu0 %v1275
          %1318 = vmatprep.subr.bf16.mxu0 0
          %1319 = vmatpush1.bf16.msra.mxu0 0
          %1320 = vmatprep.subr.bf16.mxu0 0
          %1321 = vmatpush1.bf16.msra.mxu0 0
          %1322 = vmatprep.subr.bf16.mxu0 0
          %1323 = vmatpush1.bf16.msra.mxu0 0
          %1324 = vmatprep.subr.bf16.mxu0 0
          %1325 = vmatpush1.bf16.msra.mxu0 0
          %1326 = vmatprep.subr.bf16.mxu0 0
          %1327 = vmatpush1.bf16.msra.mxu0 0
          %1328 = vmatprep.subr.bf16.mxu0 0
          %1329 = vmatpush1.bf16.msra.mxu0 0
          %1330 = vmatprep.subr.bf16.mxu0 0
          %1331 = vmatpush1.bf16.msra.mxu0 0
          %1332 = vmatprep.subr.bf16.mxu0 0
          %1333 = vmatpush1.bf16.msra.mxu0 0
          %1334 = vmatprep.mubr.bf16.mxu0 0
          %1335 = vmatmul.mubr.bf16.gmra.mrb[0].mxu0 %v1124
          %v1336 = vpop.f32.mrb[0].mxu0
          %v1337 = vadd.f32 %v1162, %v1336
          %v1338 = vpop.f32.mrb[0].mxu0
          %v1339 = vadd.f32 %v1166, %v1338
          %v1340 = vpop.f32.mrb[0].mxu0
          %v1341 = vpop.f32.mrb[0].mxu0
          %1342 = vdwg.mxu0
          %1343 = vmatprep.subr.bf16.mxu0 0
          %1344 = vmatpush1.bf16.msra.mxu0 %v1256
          %1345 = vmatprep.subr.bf16.mxu0 0
          %1346 = vmatpush1.bf16.msra.mxu0 %v1259
          %1347 = vmatprep.subr.bf16.mxu0 0
          %1348 = vmatpush1.bf16.msra.mxu0 %v1262
          %1349 = vmatprep.subr.bf16.mxu0 0
          %1350 = vmatpush1.bf16.msra.mxu0 %v1265
          %1351 = vmatprep.subr.bf16.mxu0 0
          %1352 = vmatpush1.bf16.msra.mxu0 %v1268
          %1353 = vmatprep.subr.bf16.mxu0 0
          %1354 = vmatpush1.bf16.msra.mxu0 %v1271
          %1355 = vmatprep.subr.bf16.mxu0 0
          %1356 = vmatpush1.bf16.msra.mxu0 %v1274
          %1357 = vmatprep.subr.bf16.mxu0 0
          %1358 = vmatpush1.bf16.msra.mxu0 %v1277
          %1359 = vmatprep.subr.bf16.mxu0 0
          %1360 = vmatpush1.bf16.msra.mxu0 0
          %1361 = vmatprep.subr.bf16.mxu0 0
          %1362 = vmatpush1.bf16.msra.mxu0 0
          %1363 = vmatprep.subr.bf16.mxu0 0
          %1364 = vmatpush1.bf16.msra.mxu0 0
          %1365 = vmatprep.subr.bf16.mxu0 0
          %1366 = vmatpush1.bf16.msra.mxu0 0
          %1367 = vmatprep.subr.bf16.mxu0 0
          %1368 = vmatpush1.bf16.msra.mxu0 0
          %1369 = vmatprep.subr.bf16.mxu0 0
          %1370 = vmatpush1.bf16.msra.mxu0 0
          %1371 = vmatprep.subr.bf16.mxu0 0
          %1372 = vmatpush1.bf16.msra.mxu0 0
          %1373 = vmatprep.subr.bf16.mxu0 0
          %1374 = vmatpush1.bf16.msra.mxu0 0
          %1375 = vmatprep.mubr.bf16.mxu0 0
          %1376 = vmatmul.mubr.bf16.gmra.mrb[0].mxu0 %v1124
          %v1377 = vpop.f32.mrb[0].mxu0
          %v1378 = vadd.f32 %v1170, %v1377
          %v1379 = vpop.f32.mrb[0].mxu0
          %v1380 = vpop.f32.mrb[0].mxu0
          %v1381 = vpop.f32.mrb[0].mxu0
          %1382 = vdwg.mxu0
          %v1383 = vadd.f32 %v1121, %v1337
          %v1384 = vxor.u32 %v1383, 2147483648
          %v1385 = vmul.f32 %v1384, 1.442695
          %v1386 = vpow.pop %v1385
          %v1387 = vadd.f32 %v1386, 1.0
          %v1388 = vrcp.pop %v1387
          %v1389 = vmul.f32 1.0, %v1388
          %v1390 = vadd.f32 %v1122, %v1339
          %v1391 = vxor.u32 %v1390, 2147483648
          %v1392 = vmul.f32 %v1391, 1.442695
          %v1393 = vpow.pop %v1392
          %v1394 = vadd.f32 %v1393, 1.0
          %v1395 = vrcp.pop %v1394
          %v1396 = vmul.f32 1.0, %v1395
          %v1397 = vmul.f32 %v1389, %v1378
          %v1398 = vadd.f32 %v1123, %v1397
          %v1399 = vtanh.pop %v1398
          %v1400 = vsub.f32 1.0, %v1396
          %v1401 = vmul.f32 %v1400, %v1399
          %v1402 = vmul.f32 %v1396, %v621
          %v1403 = vadd.f32 %v1401, %v1402
          %1404 = vst [vmem:[#allocation2] sm:$0xff] %v1403
          %1405 = vst [vmem:[#allocation16] sm:$0xff] %v1403
          %vm1406 = vcmask 7168
          %1407 = vst.msk [vmem:[#allocation3] sm:$0xff] %vm1406, -inf
          %1408 = vst.msk [vmem:[#allocation4] sm:$0xff] %vm1406, 0.0
        $region96: #{decoder_forward.2} parent=67 // pred_fallthru
          _
        %v1409 = vld [vmem:[#allocation2] sm:$0xff]
        %v1410 = vpack.c.bf16 %v1409, %v1409
        %v1411 = vld [vmem:[%s532] sm:$0xf]
        %v1412 = vld [vmem:[%s532 + $0x4] sm:$0xf]
        %v1413 = vld [vmem:[%s532 + $0x8] sm:$0xf]
        %v1414 = vld [vmem:[%s532 + $0xc] sm:$0xf]
        %v1415 = vld [vmem:[%s532 + $0x10] sm:$0xf]
        %v1416 = vld [vmem:[%s532 + $0x14] sm:$0xf]
        %v1417 = vld [vmem:[%s532 + $0x18] sm:$0xf]
        %v1418 = vld [vmem:[%s532 + $0x1c] sm:$0xf]
        %v1419 = vld [vmem:[%s532 + $0x20] sm:$0xf]
        %v1420 = vld [vmem:[%s532 + $0x24] sm:$0xf]
        %v1421 = vld [vmem:[%s532 + $0x28] sm:$0xf]
        %v1422 = vld [vmem:[%s532 + $0x2c] sm:$0xf]
        %v1423 = vld [vmem:[%s532 + $0x30] sm:$0xf]
        %v1424 = vld [vmem:[%s532 + $0x34] sm:$0xf]
        %v1425 = vld [vmem:[%s532 + $0x38] sm:$0xf]
        %v1426 = vld [vmem:[%s532 + $0x3c] sm:$0xf]
        %v1427 = vld [vmem:[%s541] sm:$0xf]
        %v1428 = vld [vmem:[%s541 + $0x4] sm:$0xf]
        %v1429 = vld [vmem:[%s541 + $0x8] sm:$0xf]
        %v1430 = vld [vmem:[%s541 + $0xc] sm:$0xf]
        %v1431 = vld [vmem:[%s541 + $0x10] sm:$0xf]
        %v1432 = vld [vmem:[%s541 + $0x14] sm:$0xf]
        %v1433 = vld [vmem:[%s541 + $0x18] sm:$0xf]
        %v1434 = vld [vmem:[%s541 + $0x1c] sm:$0xf]
        %v1435 = vld [vmem:[%s541 + $0x20] sm:$0xf]
        %v1436 = vld [vmem:[%s541 + $0x24] sm:$0xf]
        %v1437 = vld [vmem:[%s541 + $0x28] sm:$0xf]
        %v1438 = vld [vmem:[%s541 + $0x2c] sm:$0xf]
        %v1439 = vld [vmem:[%s541 + $0x30] sm:$0xf]
        %v1440 = vld [vmem:[%s541 + $0x34] sm:$0xf]
        %v1441 = vld [vmem:[%s541 + $0x38] sm:$0xf]
        %v1442 = vld [vmem:[%s541 + $0x3c] sm:$0xf]
        %v1459 = vunpack.c.l.b16 %v1427
        %v1460 = vunpack.c.l.b16 %v1428
        %v1461 = vunpack.c.l.b16 %v1429
        %v1462 = vunpack.c.l.b16 %v1430
        %v1463 = vunpack.c.l.b16 %v1431
        %v1464 = vunpack.c.l.b16 %v1432
        %v1465 = vunpack.c.l.b16 %v1433
        %v1466 = vunpack.c.l.b16 %v1434
        %v1467 = vunpack.c.l.b16 %v1435
        %v1468 = vunpack.c.l.b16 %v1436
        %v1469 = vunpack.c.l.b16 %v1437
        %v1470 = vunpack.c.l.b16 %v1438
        %v1471 = vunpack.c.l.b16 %v1439
        %v1472 = vunpack.c.l.b16 %v1440
        %v1473 = vunpack.c.l.b16 %v1441
        %v1474 = vunpack.c.l.b16 %v1442
        %v1475 = vpack.c.b16 %v1460, %v1459
        %v1476 = vpack.c.b16 %v1462, %v1461
        %v1477 = vpack.c.b16 %v1464, %v1463
        %v1478 = vpack.c.b16 %v1466, %v1465
        %v1479 = vpack.c.b16 %v1468, %v1467
        %v1480 = vpack.c.b16 %v1470, %v1469
        %v1481 = vpack.c.b16 %v1472, %v1471
        %v1482 = vpack.c.b16 %v1474, %v1473
        %1491 = vmatprep.subr.bf16.mxu0 0
        %1492 = vmatpush1.bf16.msra.mxu0 %v1475
        %1493 = vmatprep.subr.bf16.mxu0 0
        %1494 = vmatpush1.bf16.msra.mxu0 %v1476
        %1495 = vmatprep.subr.bf16.mxu0 0
        %1496 = vmatpush1.bf16.msra.mxu0 %v1477
        %1497 = vmatprep.subr.bf16.mxu0 0
        %1498 = vmatpush1.bf16.msra.mxu0 %v1478
        %1499 = vmatprep.subr.bf16.mxu0 0
        %1500 = vmatpush1.bf16.msra.mxu0 %v1479
        %1501 = vmatprep.subr.bf16.mxu0 0
        %1502 = vmatpush1.bf16.msra.mxu0 %v1480
        %1503 = vmatprep.subr.bf16.mxu0 0
        %1504 = vmatpush1.bf16.msra.mxu0 %v1481
        %1505 = vmatprep.subr.bf16.mxu0 0
        %1506 = vmatpush1.bf16.msra.mxu0 %v1482
        %1507 = vmatprep.subr.bf16.mxu0 0
        %1508 = vmatpush1.bf16.msra.mxu0 0
        %1509 = vmatprep.subr.bf16.mxu0 0
        %1510 = vmatpush1.bf16.msra.mxu0 0
        %1511 = vmatprep.subr.bf16.mxu0 0
        %1512 = vmatpush1.bf16.msra.mxu0 0
        %1513 = vmatprep.subr.bf16.mxu0 0
        %1514 = vmatpush1.bf16.msra.mxu0 0
        %1515 = vmatprep.subr.bf16.mxu0 0
        %1516 = vmatpush1.bf16.msra.mxu0 0
        %1517 = vmatprep.subr.bf16.mxu0 0
        %1518 = vmatpush1.bf16.msra.mxu0 0
        %1519 = vmatprep.subr.bf16.mxu0 0
        %1520 = vmatpush1.bf16.msra.mxu0 0
        %1521 = vmatprep.subr.bf16.mxu0 0
        %1522 = vmatpush1.bf16.msra.mxu0 0
        %1523 = vmatprep.mubr.bf16.mxu0 0
        %1524 = vmatmul.mubr.bf16.gmra.mrb[0].mxu0 %v1410
        %v1525 = vpop.f32.mrb[0].mxu0
        %v1526 = vadd.f32 0.0, %v1525
        %v1527 = vpop.f32.mrb[0].mxu0
        %v1528 = vpop.f32.mrb[0].mxu0
        %v1529 = vpop.f32.mrb[0].mxu0
        %1530 = vdwg.mxu0
        %v1547 = vunpack.c.l.b16 %v1411
        %v1548 = vunpack.c.l.b16 %v1412
        %v1549 = vunpack.c.l.b16 %v1413
        %v1550 = vunpack.c.l.b16 %v1414
        %v1551 = vunpack.c.l.b16 %v1415
        %v1552 = vunpack.c.l.b16 %v1416
        %v1553 = vunpack.c.l.b16 %v1417
        %v1554 = vunpack.c.l.b16 %v1418
        %v1555 = vunpack.c.l.b16 %v1419
        %v1556 = vunpack.c.l.b16 %v1420
        %v1557 = vunpack.c.l.b16 %v1421
        %v1558 = vunpack.c.l.b16 %v1422
        %v1559 = vunpack.c.l.b16 %v1423
        %v1560 = vunpack.c.l.b16 %v1424
        %v1561 = vunpack.c.l.b16 %v1425
        %v1562 = vunpack.c.l.b16 %v1426
        %v1563 = vpack.c.b16 %v1548, %v1547
        %v1564 = vpack.c.b16 %v1550, %v1549
        %v1565 = vpack.c.b16 %v1552, %v1551
        %v1566 = vpack.c.b16 %v1554, %v1553
        %v1567 = vpack.c.b16 %v1556, %v1555
        %v1568 = vpack.c.b16 %v1558, %v1557
        %v1569 = vpack.c.b16 %v1560, %v1559
        %v1570 = vpack.c.b16 %v1562, %v1561
        %1579 = vmatprep.subr.bf16.mxu0 0
        %1580 = vmatpush1.bf16.msra.mxu0 %v1563
        %1581 = vmatprep.subr.bf16.mxu0 0
        %1582 = vmatpush1.bf16.msra.mxu0 %v1564
        %1583 = vmatprep.subr.bf16.mxu0 0
        %1584 = vmatpush1.bf16.msra.mxu0 %v1565
        %1585 = vmatprep.subr.bf16.mxu0 0
        %1586 = vmatpush1.bf16.msra.mxu0 %v1566
        %1587 = vmatprep.subr.bf16.mxu0 0
        %1588 = vmatpush1.bf16.msra.mxu0 %v1567
        %1589 = vmatprep.subr.bf16.mxu0 0
        %1590 = vmatpush1.bf16.msra.mxu0 %v1568
        %1591 = vmatprep.subr.bf16.mxu0 0
        %1592 = vmatpush1.bf16.msra.mxu0 %v1569
        %1593 = vmatprep.subr.bf16.mxu0 0
        %1594 = vmatpush1.bf16.msra.mxu0 %v1570
        %1595 = vmatprep.subr.bf16.mxu0 0
        %1596 = vmatpush1.bf16.msra.mxu0 0
        %1597 = vmatprep.subr.bf16.mxu0 0
        %1598 = vmatpush1.bf16.msra.mxu0 0
        %1599 = vmatprep.subr.bf16.mxu0 0
        %1600 = vmatpush1.bf16.msra.mxu0 0
        %1601 = vmatprep.subr.bf16.mxu0 0
        %1602 = vmatpush1.bf16.msra.mxu0 0
        %1603 = vmatprep.subr.bf16.mxu0 0
        %1604 = vmatpush1.bf16.msra.mxu0 0
        %1605 = vmatprep.subr.bf16.mxu0 0
        %1606 = vmatpush1.bf16.msra.mxu0 0
        %1607 = vmatprep.subr.bf16.mxu0 0
        %1608 = vmatpush1.bf16.msra.mxu0 0
        %1609 = vmatprep.subr.bf16.mxu0 0
        %1610 = vmatpush1.bf16.msra.mxu0 0
        %1611 = vmatprep.mubr.bf16.mxu0 0
        %1612 = vmatmul.mubr.bf16.gmra.mrb[0].mxu0 %v615
        %v1613 = vpop.f32.mrb[0].mxu0
        %v1614 = vadd.f32 %v1526, %v1613
        %v1615 = vpop.f32.mrb[0].mxu0
        %v1616 = vpop.f32.mrb[0].mxu0
        %v1617 = vpop.f32.mrb[0].mxu0
        %1618 = vdwg.mxu0
        %v1619 = vld [vmem:[%s550] sm:$0xf]
        %v1620 = vld [vmem:[%s550 + $0x4] sm:$0xf]
        %v1621 = vld [vmem:[%s550 + $0x8] sm:$0xf]
        %v1622 = vld [vmem:[%s550 + $0xc] sm:$0xf]
        %v1623 = vld [vmem:[%s550 + $0x10] sm:$0xf]
        %v1624 = vld [vmem:[%s550 + $0x14] sm:$0xf]
        %v1625 = vld [vmem:[%s550 + $0x18] sm:$0xf]
        %v1626 = vld [vmem:[%s550 + $0x1c] sm:$0xf]
        %v1627 = vld [vmem:[%s550 + $0x20] sm:$0xf]
        %v1628 = vld [vmem:[%s550 + $0x24] sm:$0xf]
        %v1629 = vld [vmem:[%s550 + $0x28] sm:$0xf]
        %v1630 = vld [vmem:[%s550 + $0x2c] sm:$0xf]
        %v1631 = vld [vmem:[%s550 + $0x30] sm:$0xf]
        %v1632 = vld [vmem:[%s550 + $0x34] sm:$0xf]
        %v1633 = vld [vmem:[%s550 + $0x38] sm:$0xf]
        %v1634 = vld [vmem:[%s550 + $0x3c] sm:$0xf]
        %v1651 = vunpack.c.l.b16 %v1619
        %v1652 = vunpack.c.l.b16 %v1620
        %v1653 = vunpack.c.l.b16 %v1621
        %v1654 = vunpack.c.l.b16 %v1622
        %v1655 = vunpack.c.l.b16 %v1623
        %v1656 = vunpack.c.l.b16 %v1624
        %v1657 = vunpack.c.l.b16 %v1625
        %v1658 = vunpack.c.l.b16 %v1626
        %v1659 = vunpack.c.l.b16 %v1627
        %v1660 = vunpack.c.l.b16 %v1628
        %v1661 = vunpack.c.l.b16 %v1629
        %v1662 = vunpack.c.l.b16 %v1630
        %v1663 = vunpack.c.l.b16 %v1631
        %v1664 = vunpack.c.l.b16 %v1632
        %v1665 = vunpack.c.l.b16 %v1633
        %v1666 = vunpack.c.l.b16 %v1634
        %v1667 = vpack.c.b16 %v1652, %v1651
        %v1668 = vpack.c.b16 %v1654, %v1653
        %v1669 = vpack.c.b16 %v1656, %v1655
        %v1670 = vpack.c.b16 %v1658, %v1657
        %v1671 = vpack.c.b16 %v1660, %v1659
        %v1672 = vpack.c.b16 %v1662, %v1661
        %v1673 = vpack.c.b16 %v1664, %v1663
        %v1674 = vpack.c.b16 %v1666, %v1665
        %1683 = vmatprep.subr.bf16.mxu0 0
        %1684 = vmatpush1.bf16.msra.mxu0 %v1667
        %1685 = vmatprep.subr.bf16.mxu0 0
        %1686 = vmatpush1.bf16.msra.mxu0 %v1668
        %1687 = vmatprep.subr.bf16.mxu0 0
        %1688 = vmatpush1.bf16.msra.mxu0 %v1669
        %1689 = vmatprep.subr.bf16.mxu0 0
        %1690 = vmatpush1.bf16.msra.mxu0 %v1670
        %1691 = vmatprep.subr.bf16.mxu0 0
        %1692 = vmatpush1.bf16.msra.mxu0 %v1671
        %1693 = vmatprep.subr.bf16.mxu0 0
        %1694 = vmatpush1.bf16.msra.mxu0 %v1672
        %1695 = vmatprep.subr.bf16.mxu0 0
        %1696 = vmatpush1.bf16.msra.mxu0 %v1673
        %1697 = vmatprep.subr.bf16.mxu0 0
        %1698 = vmatpush1.bf16.msra.mxu0 %v1674
        %1699 = vmatprep.subr.bf16.mxu0 0
        %1700 = vmatpush1.bf16.msra.mxu0 0
        %1701 = vmatprep.subr.bf16.mxu0 0
        %1702 = vmatpush1.bf16.msra.mxu0 0
        %1703 = vmatprep.subr.bf16.mxu0 0
        %1704 = vmatpush1.bf16.msra.mxu0 0
        %1705 = vmatprep.subr.bf16.mxu0 0
        %1706 = vmatpush1.bf16.msra.mxu0 0
        %1707 = vmatprep.subr.bf16.mxu0 0
        %1708 = vmatpush1.bf16.msra.mxu0 0
        %1709 = vmatprep.subr.bf16.mxu0 0
        %1710 = vmatpush1.bf16.msra.mxu0 0
        %1711 = vmatprep.subr.bf16.mxu0 0
        %1712 = vmatpush1.bf16.msra.mxu0 0
        %1713 = vmatprep.subr.bf16.mxu0 0
        %1714 = vmatpush1.bf16.msra.mxu0 0
        %1715 = vmatprep.mubr.bf16.mxu0 0
        %1716 = vmatmul.mubr.bf16.gmra.mrb[0].mxu0 %v616
        %v1717 = vpop.f32.mrb[0].mxu0
        %v1718 = vadd.f32 0.0, %v1717
        %v1719 = vpop.f32.mrb[0].mxu0
        %v1720 = vpop.f32.mrb[0].mxu0
        %v1721 = vpop.f32.mrb[0].mxu0
        %1722 = vdwg.mxu0
        %v1723 = vadd.f32 %v1614, %v1718
        %v1724 = vld [vmem:[%s609] sm:$0x1]
        %v1726 = vlaneseq
        %v1727 = vshrl.u32 %v1726, 7
        %v1728 = vsub.s32 0, %v1727
        %v1729 = vrot.slane %v1724, %v1728
        %v1731 = vadd.f32 %v1723, %v1729
        %1732 = vst [vmem:[%s613] sm:$0xff] %v1731
        %1733 = vmax.xlane.f32.xlu0 %v1731
        %v1734 = vpop.xlane.xlu0 %1733
        %v1735 = vld [vmem:[#allocation3] sm:$0xff]
        %v1736 = vmax.f32 %v1735, %v1734
        %v1737 = vld [vmem:[#allocation4] sm:$0xff]
        %v1738 = vsub.f32 %v1735, %v1736
        %v1739 = vmul.f32 %v1738, 1.442695
        %v1740 = vpow.pop %v1739
        %v1741 = vmul.f32 %v1737, %v1740
        %1743 = vset.pattern.permute.xlu0 0
        %1744 = vperm.xlu0 %1743, %v1736
        %v1745 = vpop.permute.xlu0 %1744
        %v1747 = vsub.f32 %v1731, %v1745
        %v1748 = vmul.f32 %v1747, 1.442695
        %v1749 = vpow.pop %v1748
        %1750 = vadd.xlane.f32.xlu0 %v1749
        %v1751 = vpop.xlane.xlu0 %1750
        %v1752 = vadd.f32 %v1741, %v1751
        %vm1753 = vcmask 7168
        %1754 = vst.msk [vmem:[#allocation4] sm:$0xff] %vm1753, %v1752
        %1755 = vst.msk [vmem:[#allocation3] sm:$0xff] %vm1753, %v1736
        %p1756 = scmp.eq.s32.totalorder %s35, 3
        // Predicated region
        $region97: #{decoder_forward.2} parent=67 // pred_check
          %p1757 = pneg %p1756
        $region98: #{decoder_forward.2} parent=67 // pred_check_branch
          %1759 = sbr.rel (%p1757) target = $region100
        $region99: #{decoder_forward.2} parent=67 // pred_region
          %v1760 = vld [vmem:[#allocation3] sm:$0xff]
          %v1761 = vld [vmem:[#allocation4] sm:$0xff]
          %v1762 = vlog2.pop %v1761
          %v1763 = vmul.f32 %v1762, 0.6931472
          %v1764 = vadd.f32 %v1760, %v1763
          %1765 = vst.msk [vmem:[%s14] sm:$0xff] %vm1753, %v1764
        $region100: #{decoder_forward.2} parent=67 // pred_fallthru
          _
        %p1766 = scmp.lt.s32.totalorder %s35, 3
        %s1767 = scalar_select %p1766, %s35, 3
        %s1768 = smul.addr %s1767, 8
        %s1769 = scalar_lea.vmem %s12, %s1768
        // Predicated region
        $region101: #{decoder_forward.2} parent=67 // pred_check
          %p1770 = pneg %p325
        $region102: #{decoder_forward.2} parent=67 // pred_check_branch
          %1772 = sbr.rel (%p1770) target = $region104
        $region103: #{decoder_forward.2} parent=67 // pred_region
          _
        $region104: #{decoder_forward.2} parent=67 // pred_fallthru
          _
        // Predicated region
        $region105: #{decoder_forward.2} parent=67 // pred_check
          %p1773 = pneg %p346
        $region106: #{decoder_forward.2} parent=67 // pred_check_branch
          %1775 = sbr.rel (%p1773) target = $region108
        $region107: #{decoder_forward.2} parent=67 // pred_region
          %s1777 = ssub.s32 128, 128
          %1778 = vsyncadd [#allocation7], %s1777
          %s1780 = sshll.u32 [#allocation16], 4
          %s1781 = int_to_ptr.vmem [resolvable:$true] %s1780
          %1783 = dma.vmem_to_hbm [thread:$0]  %s1781, 128, %s13, [#allocation7]
        $region108: #{decoder_forward.2} parent=67 // pred_fallthru
          _
        // Predicated region
        $region109: #{decoder_forward.2} parent=67 // pred_check
          %p1784 = pneg %p367
        $region110: #{decoder_forward.2} parent=67 // pred_check_branch
          %1786 = sbr.rel (%p1784) target = $region112
        $region111: #{decoder_forward.2} parent=67 // pred_region
          _
        $region112: #{decoder_forward.2} parent=67 // pred_fallthru
          _
        // Predicated region
        $region113: #{decoder_forward.2} parent=67 // pred_check
          %p1787 = pneg %p346
        $region114: #{decoder_forward.2} parent=67 // pred_check_branch
          %1789 = sbr.rel (%p1787) target = $region116
        $region115: #{decoder_forward.2} parent=67 // pred_region
          %1790 = dma.done [#allocation7], 128
        $region116: #{decoder_forward.2} parent=67 // pred_fallthru
          _
        // Predicated region
        $region117: #{decoder_forward.2} parent=67 // pred_check
          %p1791 = pneg %p367
        $region118: #{decoder_forward.2} parent=67 // pred_check_branch
          %1793 = sbr.rel (%p1791) target = $region120
        $region119: #{decoder_forward.2} parent=67 // pred_region
          _
        $region120: #{decoder_forward.2} parent=67 // pred_fallthru
          _
      $region68: #{decoder_forward.2} parent=5 // pred_fallthru
        _
      %p1794 = scmp.le.s32.totalorder 2, %s30
      // Predicated region
      $region121: #{decoder_forward.2} parent=5 // pred_check
        %p1795 = pneg %p1794
      $region122: #{decoder_forward.2} parent=5 // pred_check_branch
        %1797 = sbr.rel (%p1795) target = $region124
      $region123: #{decoder_forward.2} parent=5 // pred_region
        %s1798 = ssub.s32 %s30, 2
        // Predicated region
        $region125: #{decoder_forward.2} parent=123 // pred_check
          %p1799 = pneg %p331
        $region126: #{decoder_forward.2} parent=123 // pred_check_branch
          %1801 = sbr.rel (%p1799) target = $region128
        $region127: #{decoder_forward.2} parent=123 // pred_region
          %p1802 = scmp.lt.s32.totalorder %s36, 3
          %s1803 = scalar_select %p1802, %s36, 3
          %s1804 = smul.addr %s1803, 8
          %s1805 = scalar_lea.vmem %s12, %s1804
        $region128: #{decoder_forward.2} parent=123 // pred_fallthru
          _
      $region124: #{decoder_forward.2} parent=5 // pred_fallthru
        _
    $region6: #{decoder_forward.2} parent=1 // loop_footer
      %s34 = sadd.s32 1, %s30
    $region7: #{decoder_forward.2} parent=1 // loop_footer_branch
      %29 = sbr.rel target = $region3
    $region8: #{decoder_forward.2} parent=1 // loop_exit
      _
    %1806 = vsyncpa [#allocation6], 1
    %s1807 = scalar_lea.sflag [#allocation6], 1
    %1808 = vsyncpa %s1807, 1
    %1809 = vsyncpa [#allocation9], 1
    %1810 = vsyncpa [#allocation12], 1
    %s1811 = scalar_lea.sflag [#allocation12], 1
    %1812 = vsyncpa %s1811, 1
    %1813 = vsyncpa [#allocation15], 1
    %s1814 = scalar_lea.sflag [#allocation15], 1
    %1815 = vsyncpa %s1814, 1
    %1816 = vsyncpa [#allocation7], 1
    %s1817 = scalar_lea.sflag [#allocation7], 1
    %1818 = vsyncpa %s1817, 1

</llo_original>
